<compile_context>
chip_gen: v7x
topology: tpu7x:2x2x1
jax: 0.10.0
libtpu: 0.0.40
codegen_flags: <defaults>
</compile_context>

<pallas_src>
import functools

import jax
import jax.numpy as jnp
import numpy as np
from jax.experimental import pallas as pl
from jax.experimental.pallas import tpu as pltpu

LN_EPS = 1e-6


def _gelu_tanh(x):
    # TODO(synk): PyTorch nn.GELU() default is the exact erf form; erf has no
    # guaranteed Mosaic lowering, so the tanh approximation is used here.
    c = jnp.float32(0.7978845608028654)  # sqrt(2/pi)
    return 0.5 * x * (1.0 + jnp.tanh(c * (x + 0.044715 * x * x * x)))


def _layernorm(x, g, b):
    mu = jnp.mean(x, axis=-1, keepdims=True)
    var = jnp.mean(jnp.square(x - mu), axis=-1, keepdims=True)
    return (x - mu) * jax.lax.rsqrt(var + LN_EPS) * g + b


def transformer_stack_kernel(
        x_ref,
        ln1_g_ref, ln1_b_ref,
        wqkv_ref, bqkv_ref,            # (D, 3D), (1, 3D)   [scale folded into q cols]
        wo_ref, bo_ref,                # (D, D),  (1, D)
        ln2_g_ref, ln2_b_ref,
        w1_ref, b1_ref, w2_ref, b2_ref,
        o_ref,
        acc_ref,                       # VMEM scratch (Bt, S, D) f32, carried over layers
        *, num_heads):
    """Grid = (batch_tile, layer). One step = one block on Bt batch rows."""
    layer = pl.program_id(1)
    last_layer = pl.num_programs(1) - 1

    # Layer 0: pull the input activation into the resident VMEM buffer.
    @pl.when(layer == 0)
    def _():
        acc_ref[...] = x_ref[...].astype(jnp.float32)

    Bt, S, D = acc_ref.shape
    H = num_heads
    hd = D // H

    x = acc_ref[...].reshape(Bt * S, D)               # (Bt*S, D) f32

    # ---- pre-attention LayerNorm (f32 statistics) ----
    xn1 = _layernorm(x, ln1_g_ref[...], ln1_b_ref[...])

    # ---- fused lane-dense QKV projection: one (Bt*S, D) @ (D, 3D) matmul ----
    qkv = jnp.dot(xn1.astype(jnp.bfloat16), wqkv_ref[...],
                  preferred_element_type=jnp.float32) + bqkv_ref[...]       # (Bt*S, 3D)
    qkv3 = qkv.reshape(Bt, S, 3 * D)

    # Split heads via static lane slices, stacked along a new batch axis
    # (no broadcasted LHS, no 4-D transpose).
    def heads(base):
        parts = [qkv3[:, :, base + h * hd: base + (h + 1) * hd] for h in range(H)]
        return jnp.concatenate(parts, axis=0).astype(jnp.bfloat16)          # (H*Bt, S, hd)

    qh = heads(0 * D)   # already scaled by 1/sqrt(hd) (folded into wqkv/bqkv)
    kh = heads(1 * D)
    vh = heads(2 * D)

    # ---- batched scaled dot-product attention (no mask), softmax in f32 ----
    scores = jnp.einsum("bqe,bke->bqk", qh, kh,
                        preferred_element_type=jnp.float32)                 # (H*Bt, S, S)
    m = jnp.max(scores, axis=-1, keepdims=True)
    p = jnp.exp(scores - m)
    denom = jnp.sum(p, axis=-1, keepdims=True)
    ctx = jnp.einsum("bqk,bke->bqe", p.astype(jnp.bfloat16), vh,
                     preferred_element_type=jnp.float32)                    # (H*Bt, S, hd)
    # Deferred softmax normalization: rescale the (S, hd) context instead of
    # the (S, S) probability matrix; reciprocal runs on the EUP slot.
    ctx = ctx * pl.reciprocal(denom, approx=True)

    # Merge heads back: (H*Bt, S, hd) -> (Bt, S, D) -> (Bt*S, D)
    ctx2d = jnp.concatenate([ctx[h * Bt:(h + 1) * Bt] for h in range(H)],
                            axis=-1).reshape(Bt * S, D)

    # ---- fused output projection: one (Bt*S, D) @ (D, D) matmul ----
    attn = jnp.dot(ctx2d.astype(jnp.bfloat16), wo_ref[...],
                   preferred_element_type=jnp.float32) + bo_ref[...]
    x1 = attn + x                                                           # residual (f32)

    # ---- feed forward ----
    xn2 = _layernorm(x1, ln2_g_ref[...], ln2_b_ref[...])
    h1 = jnp.dot(xn2.astype(jnp.bfloat16), w1_ref[...],
                 preferred_element_type=jnp.float32) + b1_ref[...]
    h1 = _gelu_tanh(h1)
    h2 = jnp.dot(h1.astype(jnp.bfloat16), w2_ref[...],
                 preferred_element_type=jnp.float32) + b2_ref[...]

    out = (h2 + x1).reshape(Bt, S, D)
    acc_ref[...] = out                                # carry to next layer

    @pl.when(layer == last_layer)
    def _():
        o_ref[...] = out.astype(o_ref.dtype)


def _pick_batch_tile(B):
    """Rows per grid step: amortize weight DMA, keep >=2 batch steps when B allows."""
    if B >= 4 and B % 2 == 0:
        return B // 2
    return B


def _vmem_limit_bytes(Bt, S, D, FF, H):
    """Generation-aware VMEM limit derived from actual tile sizes."""
    bf16, f32 = 2, 4
    weight_bytes = (D * 3 * D + D * D + D * FF + FF * D) * bf16
    bias_bytes = (3 * D + FF + 7 * D) * f32
    streamed = 2 * (weight_bytes + bias_bytes + Bt * S * D * f32)   # double-buffered inputs
    resident = 2 * Bt * S * D * f32                                 # out block + acc scratch
    temporaries = (Bt * S * (3 * D + FF + 4 * D) + H * Bt * S * S) * f32
    need = streamed + resident + temporaries + (8 << 20)            # headroom
    try:
        phys = getattr(pltpu.get_tpu_info(), "vmem_capacity_bytes", 128 << 20)
    except Exception:  # pragma: no cover - info query unavailable
        phys = 64 << 20
    return int(min(max(need, 32 << 20), int(phys * 0.6)))


def transformer_forward(x, stacked, num_heads, batch_tile=None):
    """x: (B, S, D); stacked: dict of per-layer-stacked params (leading dim L)."""
    B, S, D = x.shape
    L = stacked["ln1_g"].shape[0]
    FF = stacked["w1"].shape[-1]
    Bt = _pick_batch_tile(B) if batch_tile is None else batch_tile
    assert B % Bt == 0, "batch tile must divide batch"

    def wspec(shape):
        nd = len(shape)
        return pl.BlockSpec((None,) + tuple(shape),
                            lambda b, l, _nd=nd: (l,) + (0,) * _nd)

    grid_spec = pltpu.PrefetchScalarGridSpec(
        num_scalar_prefetch=0,
        grid=(B // Bt, L),                               # batch parallel, layers sequential
        in_specs=[
            pl.BlockSpec((Bt, S, D), lambda b, l: (b, 0, 0)),     # x
            wspec((1, D)), wspec((1, D)),                         # ln1 gamma/beta
            wspec((D, 3 * D)), wspec((1, 3 * D)),                 # wqkv, bqkv
            wspec((D, D)), wspec((1, D)),                         # wo, bo
            wspec((1, D)), wspec((1, D)),                         # ln2 gamma/beta
            wspec((D, FF)), wspec((1, FF)),                       # w1, b1
            wspec((FF, D)), wspec((1, D)),                        # w2, b2
        ],
        out_specs=pl.BlockSpec((Bt, S, D), lambda b, l: (b, 0, 0)),
        scratch_shapes=[pltpu.VMEM((Bt, S, D), jnp.float32)],
    )

    kernel = functools.partial(transformer_stack_kernel, num_heads=num_heads)
    return pl.pallas_call(
        kernel,
        out_shape=jax.ShapeDtypeStruct((B, S, D), x.dtype),
        grid_spec=grid_spec,
        compiler_params=pltpu.CompilerParams(
            dimension_semantics=("parallel", "arbitrary"),
            vmem_limit_bytes=_vmem_limit_bytes(Bt, S, D, FF, num_heads),
        ),
    )(x, stacked["ln1_g"], stacked["ln1_b"],
      stacked["wqkv"], stacked["bqkv"],
      stacked["wo"], stacked["bo"],
      stacked["ln2_g"], stacked["ln2_b"],
      stacked["w1"], stacked["b1"],
      stacked["w2"], stacked["b2"])


# ---------------- parameter construction & packing ----------------
def init_block_params(key, D, FF):
    """Natural (torch-like, pre-transposed so y = x @ W + b) params in f32."""
    ks = jax.random.split(key, 12)
    std = 0.02

    def w(k, shape):
        return (std * jax.random.normal(k, shape)).astype(jnp.float32)

    return dict(
        ln1_g=jnp.ones((1, D), jnp.float32), ln1_b=jnp.zeros((1, D), jnp.float32),
        wq=w(ks[0], (D, D)), wk=w(ks[1], (D, D)), wv=w(ks[2], (D, D)),
        bq=w(ks[3], (1, D)), bk=w(ks[4], (1, D)), bv=w(ks[5], (1, D)),
        wo=w(ks[6], (D, D)), bo=w(ks[7], (1, D)),
        ln2_g=jnp.ones((1, D), jnp.float32), ln2_b=jnp.zeros((1, D), jnp.float32),
        w1=w(ks[8], (D, FF)), b1=w(ks[9], (1, FF)),
        w2=w(ks[10], (FF, D)), b2=w(ks[11], (1, D)),
    )


def pack_params(blocks, num_heads):
    """Stack per-layer params into the kernel's lane-dense bf16 layout.

    wqkv: (L, D, 3D) = [wq * 1/sqrt(hd) | wk | wv]   (heads are consecutive
    column groups of hd inside each D block — same ordering as the reference
    reshape(S, H, hd)).  The 1/sqrt(hd) attention scale is folded into the q
    weight/bias here so the kernel never multiplies by it.
    """
    D = blocks[0]["wq"].shape[0]
    hd = D // num_heads
    scale = jnp.float32(1.0 / np.sqrt(hd))

    wqkv = [jnp.concatenate([p["wq"] * scale, p["wk"], p["wv"]], axis=-1)
            for p in blocks]                                          # (D, 3D)
    bqkv = [jnp.concatenate([p["bq"] * scale, p["bk"], p["bv"]], axis=-1)
            for p in blocks]                                          # (1, 3D)

    return dict(
        ln1_g=jnp.stack([p["ln1_g"] for p in blocks]),
        ln1_b=jnp.stack([p["ln1_b"] for p in blocks]),
        wqkv=jnp.stack(wqkv).astype(jnp.bfloat16),
        bqkv=jnp.stack(bqkv),                                   # bias stays f32
        wo=jnp.stack([p["wo"] for p in blocks]).astype(jnp.bfloat16),
        bo=jnp.stack([p["bo"] for p in blocks]),
        ln2_g=jnp.stack([p["ln2_g"] for p in blocks]),
        ln2_b=jnp.stack([p["ln2_b"] for p in blocks]),
        w1=jnp.stack([p["w1"] for p in blocks]).astype(jnp.bfloat16),
        b1=jnp.stack([p["b1"] for p in blocks]),
        w2=jnp.stack([p["w2"] for p in blocks]).astype(jnp.bfloat16),
        b2=jnp.stack([p["b2"] for p in blocks]),
    )


# ---------------- pure-JAX f32 reference (natural layout) ----------------
def ref_block(x, p, num_heads):
    B, S, D = x.shape
    hd = D // num_heads
    xn1 = _layernorm(x, p["ln1_g"], p["ln1_b"])
    q = xn1 @ p["wq"] + p["bq"]
    k = xn1 @ p["wk"] + p["bk"]
    v = xn1 @ p["wv"] + p["bv"]
    q = q.reshape(B, S, num_heads, hd).transpose(0, 2, 1, 3)
    k = k.reshape(B, S, num_heads, hd).transpose(0, 2, 1, 3)
    v = v.reshape(B, S, num_heads, hd).transpose(0, 2, 1, 3)
    scores = jnp.einsum("bhqd,bhkd->bhqk", q, k) / np.sqrt(hd)
    pmat = jax.nn.softmax(scores, axis=-1)
    ctx = jnp.einsum("bhqk,bhkd->bhqd", pmat, v).transpose(0, 2, 1, 3).reshape(B, S, D)
    attn = ctx @ p["wo"] + p["bo"]
    x1 = attn + x
    xn2 = _layernorm(x1, p["ln2_g"], p["ln2_b"])
    h1 = _gelu_tanh(xn2 @ p["w1"] + p["b1"])
    h2 = h1 @ p["w2"] + p["b2"]
    return h2 + x1


if __name__ == "__main__":
    # GatoConfig-like small setup: layer_width=32, num_attention_heads=4,
    # feedforward_hidden_size=4*layer_width, num_transformer_blocks=2.
    B, S, D = 2, 8, 32
    NUM_HEADS = 4
    FF = 4 * D
    NUM_BLOCKS = 2

    key = jax.random.PRNGKey(0)
    kx, *kblocks = jax.random.split(key, NUM_BLOCKS + 1)
    x = jax.random.normal(kx, (B, S, D), dtype=jnp.float32)
    blocks = [init_block_params(kb, D, FF) for kb in kblocks]
    stacked = pack_params(blocks, NUM_HEADS)

    out = transformer_forward(x, stacked, NUM_HEADS)
    out = jax.block_until_ready(out)

    # validate against the pure-JAX f32 reference (kernel uses bf16 matmuls +
    # approx reciprocal, so allow a bf16-level tolerance)
    ref = x
    for p in blocks:
        ref = ref_block(ref, p, NUM_HEADS)
    np.testing.assert_allclose(np.asarray(out), np.asarray(ref), atol=2e-2, rtol=2e-2)

    print("KERNEL_OK")
</pallas_src>

<mosaic_0001>
module attributes {stable_mosaic.version = 11 : i64} {
  func.func @transformer_stack_kernel(%arg0: i32, %arg1: i32, %arg2: memref<2x8x32xf32, #tpu.memory_space<vmem>>, %arg3: memref<1x1x32xf32, #tpu.memory_space<vmem>>, %arg4: memref<1x1x32xf32, #tpu.memory_space<vmem>>, %arg5: memref<1x32x96xbf16, #tpu.memory_space<vmem>>, %arg6: memref<1x1x96xf32, #tpu.memory_space<vmem>>, %arg7: memref<1x32x32xbf16, #tpu.memory_space<vmem>>, %arg8: memref<1x1x32xf32, #tpu.memory_space<vmem>>, %arg9: memref<1x1x32xf32, #tpu.memory_space<vmem>>, %arg10: memref<1x1x32xf32, #tpu.memory_space<vmem>>, %arg11: memref<1x32x128xbf16, #tpu.memory_space<vmem>>, %arg12: memref<1x1x128xf32, #tpu.memory_space<vmem>>, %arg13: memref<1x128x32xbf16, #tpu.memory_space<vmem>>, %arg14: memref<1x1x32xf32, #tpu.memory_space<vmem>>, %arg15: memref<2x8x32xf32, #tpu.memory_space<vmem>>, %arg16: memref<2x8x32xf32, #tpu.memory_space<vmem>>) attributes {dimension_semantics = [#tpu.dimension_semantics<parallel>, #tpu.dimension_semantics<arbitrary>], iteration_bounds = array<i64: 1, 2>, scalar_prefetch = 0 : i64, scratch_operands = 1 : i64, tpu.core_type = #tpu.core_type<tc>, window_params = [{transform_indices = @transform_0, window_bounds = array<i64: 2, 8, 32>}, {transform_indices = @transform_1, window_bounds = array<i64: 1, 1, 32>}, {transform_indices = @transform_2, window_bounds = array<i64: 1, 1, 32>}, {transform_indices = @transform_3, window_bounds = array<i64: 1, 32, 96>}, {transform_indices = @transform_4, window_bounds = array<i64: 1, 1, 96>}, {transform_indices = @transform_5, window_bounds = array<i64: 1, 32, 32>}, {transform_indices = @transform_6, window_bounds = array<i64: 1, 1, 32>}, {transform_indices = @transform_7, window_bounds = array<i64: 1, 1, 32>}, {transform_indices = @transform_8, window_bounds = array<i64: 1, 1, 32>}, {transform_indices = @transform_9, window_bounds = array<i64: 1, 32, 128>}, {transform_indices = @transform_10, window_bounds = array<i64: 1, 1, 128>}, {transform_indices = @transform_11, window_bounds = array<i64: 1, 128, 32>}, {transform_indices = @transform_12, window_bounds = array<i64: 1, 1, 32>}, {transform_indices = @transform_13, window_bounds = array<i64: 2, 8, 32>}]} {
    %c0_i32 = arith.constant 0 : i32
    %0 = arith.cmpi eq, %arg1, %c0_i32 : i32
    %1 = arith.extui %0 : i1 to i32
    %c0_i32_0 = arith.constant 0 : i32
    %2 = arith.cmpi ne, %1, %c0_i32_0 : i32
    scf.if %2 {
      %c0_64 = arith.constant 0 : index
      %c0_65 = arith.constant 0 : index
      %c0_66 = arith.constant 0 : index
      %147 = vector.load %arg2[%c0_64, %c0_65, %c0_66] : memref<2x8x32xf32, #tpu.memory_space<vmem>>, vector<2x8x32xf32>
      %c0_67 = arith.constant 0 : index
      %c0_68 = arith.constant 0 : index
      %c0_69 = arith.constant 0 : index
      %148 = vector.load %arg16[%c0_67, %c0_68, %c0_69] : memref<2x8x32xf32, #tpu.memory_space<vmem>>, vector<2x8x32xf32>
      tpu.vector_store %arg16[%c0_67, %c0_68, %c0_69], %147 {strides = array<i32>} : memref<2x8x32xf32, #tpu.memory_space<vmem>>, vector<2x8x32xf32>,
    } else {
    }
    %c0 = arith.constant 0 : index
    %c0_1 = arith.constant 0 : index
    %c0_2 = arith.constant 0 : index
    %3 = vector.load %arg16[%c0, %c0_1, %c0_2] : memref<2x8x32xf32, #tpu.memory_space<vmem>>, vector<2x8x32xf32>
    %4 = vector.shape_cast %3 : vector<2x8x32xf32> to vector<16x32xf32>
    %c0_3 = arith.constant 0 : index
    %c0_4 = arith.constant 0 : index
    %c0_5 = arith.constant 0 : index
    %5 = vector.load %arg3[%c0_3, %c0_4, %c0_5] : memref<1x1x32xf32, #tpu.memory_space<vmem>>, vector<1x1x32xf32>
    %6 = vector.shape_cast %5 : vector<1x1x32xf32> to vector<1x32xf32>
    %c0_6 = arith.constant 0 : index
    %c0_7 = arith.constant 0 : index
    %c0_8 = arith.constant 0 : index
    %7 = vector.load %arg4[%c0_6, %c0_7, %c0_8] : memref<1x1x32xf32, #tpu.memory_space<vmem>>, vector<1x1x32xf32>
    %8 = vector.shape_cast %7 : vector<1x1x32xf32> to vector<1x32xf32>
    %cst = arith.constant dense<0.000000e+00> : vector<16xf32>
    %9 = vector.multi_reduction <add>, %4, %cst [1] : vector<16x32xf32> to vector<16xf32>
    %10 = vector.shape_cast %9 : vector<16xf32> to vector<16x1xf32>
    %cst_9 = arith.constant 3.200000e+01 : f32
    %11 = vector.broadcast %cst_9 : f32 to vector<16x1xf32>
    %12 = arith.divf %10, %11 : vector<16x1xf32>
    %13 = vector.broadcast %12 : vector<16x1xf32> to vector<16x32xf32>
    %14 = arith.subf %4, %13 : vector<16x32xf32>
    %15 = arith.mulf %14, %14 : vector<16x32xf32>
    %cst_10 = arith.constant dense<0.000000e+00> : vector<16xf32>
    %16 = vector.multi_reduction <add>, %15, %cst_10 [1] : vector<16x32xf32> to vector<16xf32>
    %17 = vector.shape_cast %16 : vector<16xf32> to vector<16x1xf32>
    %cst_11 = arith.constant 3.200000e+01 : f32
    %18 = vector.broadcast %cst_11 : f32 to vector<16x1xf32>
    %19 = arith.divf %17, %18 : vector<16x1xf32>
    %20 = vector.broadcast %12 : vector<16x1xf32> to vector<16x32xf32>
    %21 = arith.subf %4, %20 : vector<16x32xf32>
    %cst_12 = arith.constant 9.99999997E-7 : f32
    %22 = vector.broadcast %cst_12 : f32 to vector<16x1xf32>
    %23 = arith.addf %19, %22 : vector<16x1xf32>
    %24 = math.rsqrt %23 : vector<16x1xf32>
    %25 = vector.broadcast %24 : vector<16x1xf32> to vector<16x32xf32>
    %26 = arith.mulf %21, %25 : vector<16x32xf32>
    %27 = vector.broadcast %6 : vector<1x32xf32> to vector<16x32xf32>
    %28 = arith.mulf %26, %27 : vector<16x32xf32>
    %29 = vector.broadcast %8 : vector<1x32xf32> to vector<16x32xf32>
    %30 = arith.addf %28, %29 : vector<16x32xf32>
    %31 = arith.truncf %30 : vector<16x32xf32> to vector<16x32xbf16>
    %c0_13 = arith.constant 0 : index
    %c0_14 = arith.constant 0 : index
    %c0_15 = arith.constant 0 : index
    %32 = vector.load %arg5[%c0_13, %c0_14, %c0_15] : memref<1x32x96xbf16, #tpu.memory_space<vmem>>, vector<1x32x96xbf16>
    %33 = vector.shape_cast %32 : vector<1x32x96xbf16> to vector<32x96xbf16>
    %cst_16 = arith.constant dense<0.000000e+00> : vector<16x96xf32>
    %34 = tpu.matmul %31, %33, %cst_16 {dimension_numbers = #tpu.dot_dimension_numbers<[1], [0], [0], [1], [0, 0, 1, 1], [], []>} : vector<16x32xbf16>, vector<32x96xbf16>, vector<16x96xf32> -> vector<16x96xf32>
    %c0_17 = arith.constant 0 : index
    %c0_18 = arith.constant 0 : index
    %c0_19 = arith.constant 0 : index
    %35 = vector.load %arg6[%c0_17, %c0_18, %c0_19] : memref<1x1x96xf32, #tpu.memory_space<vmem>>, vector<1x1x96xf32>
    %36 = vector.shape_cast %35 : vector<1x1x96xf32> to vector<1x96xf32>
    %37 = vector.broadcast %36 : vector<1x96xf32> to vector<16x96xf32>
    %38 = arith.addf %34, %37 : vector<16x96xf32>
    %39 = vector.shape_cast %38 : vector<16x96xf32> to vector<2x8x96xf32>
    %40 = vector.extract_strided_slice %39 {offsets = [0, 0, 0], sizes = [2, 8, 8], strides = [1, 1, 1]} : vector<2x8x96xf32> to vector<2x8x8xf32>
    %41 = vector.extract_strided_slice %39 {offsets = [0, 0, 8], sizes = [2, 8, 8], strides = [1, 1, 1]} : vector<2x8x96xf32> to vector<2x8x8xf32>
    %42 = vector.extract_strided_slice %39 {offsets = [0, 0, 16], sizes = [2, 8, 8], strides = [1, 1, 1]} : vector<2x8x96xf32> to vector<2x8x8xf32>
    %43 = vector.extract_strided_slice %39 {offsets = [0, 0, 24], sizes = [2, 8, 8], strides = [1, 1, 1]} : vector<2x8x96xf32> to vector<2x8x8xf32>
    %44 = tpu.concatenate %40, %41, %42, %43 in 0 : vector<2x8x8xf32>, vector<2x8x8xf32>, vector<2x8x8xf32>, vector<2x8x8xf32> -> vector<8x8x8xf32>
    %45 = arith.truncf %44 : vector<8x8x8xf32> to vector<8x8x8xbf16>
    %46 = vector.extract_strided_slice %39 {offsets = [0, 0, 32], sizes = [2, 8, 8], strides = [1, 1, 1]} : vector<2x8x96xf32> to vector<2x8x8xf32>
    %47 = vector.extract_strided_slice %39 {offsets = [0, 0, 40], sizes = [2, 8, 8], strides = [1, 1, 1]} : vector<2x8x96xf32> to vector<2x8x8xf32>
    %48 = vector.extract_strided_slice %39 {offsets = [0, 0, 48], sizes = [2, 8, 8], strides = [1, 1, 1]} : vector<2x8x96xf32> to vector<2x8x8xf32>
    %49 = vector.extract_strided_slice %39 {offsets = [0, 0, 56], sizes = [2, 8, 8], strides = [1, 1, 1]} : vector<2x8x96xf32> to vector<2x8x8xf32>
    %50 = tpu.concatenate %46, %47, %48, %49 in 0 : vector<2x8x8xf32>, vector<2x8x8xf32>, vector<2x8x8xf32>, vector<2x8x8xf32> -> vector<8x8x8xf32>
    %51 = arith.truncf %50 : vector<8x8x8xf32> to vector<8x8x8xbf16>
    %52 = vector.extract_strided_slice %39 {offsets = [0, 0, 64], sizes = [2, 8, 8], strides = [1, 1, 1]} : vector<2x8x96xf32> to vector<2x8x8xf32>
    %53 = vector.extract_strided_slice %39 {offsets = [0, 0, 72], sizes = [2, 8, 8], strides = [1, 1, 1]} : vector<2x8x96xf32> to vector<2x8x8xf32>
    %54 = vector.extract_strided_slice %39 {offsets = [0, 0, 80], sizes = [2, 8, 8], strides = [1, 1, 1]} : vector<2x8x96xf32> to vector<2x8x8xf32>
    %55 = vector.extract_strided_slice %39 {offsets = [0, 0, 88], sizes = [2, 8, 8], strides = [1, 1, 1]} : vector<2x8x96xf32> to vector<2x8x8xf32>
    %56 = tpu.concatenate %52, %53, %54, %55 in 0 : vector<2x8x8xf32>, vector<2x8x8xf32>, vector<2x8x8xf32>, vector<2x8x8xf32> -> vector<8x8x8xf32>
    %57 = arith.truncf %56 : vector<8x8x8xf32> to vector<8x8x8xbf16>
    "tpu.trace_start"() <{level = 10 : i32, message = "bqe,bke->bqk"}> : () -> ()
    %cst_20 = arith.constant dense<0.000000e+00> : vector<8x8x8xf32>
    %58 = tpu.matmul %45, %51, %cst_20 {dimension_numbers = #tpu.dot_dimension_numbers<[2], [2], [1], [1], [0, 0, 0, 1, 1, 1], [0], [0]>} : vector<8x8x8xbf16>, vector<8x8x8xbf16>, vector<8x8x8xf32> -> vector<8x8x8xf32>
    "tpu.trace_stop"() : () -> ()
    %cst_21 = arith.constant dense<0xFF800000> : vector<8x8xf32>
    %59 = vector.multi_reduction <maximumf>, %58, %cst_21 [2] : vector<8x8x8xf32> to vector<8x8xf32>
    %60 = vector.shape_cast %59 : vector<8x8xf32> to vector<8x8x1xf32>
    %61 = vector.broadcast %60 : vector<8x8x1xf32> to vector<8x8x8xf32>
    %62 = arith.subf %58, %61 : vector<8x8x8xf32>
    %63 = math.exp %62 : vector<8x8x8xf32>
    %cst_22 = arith.constant dense<0.000000e+00> : vector<8x8xf32>
    %64 = vector.multi_reduction <add>, %63, %cst_22 [2] : vector<8x8x8xf32> to vector<8x8xf32>
    %65 = vector.shape_cast %64 : vector<8x8xf32> to vector<8x8x1xf32>
    %66 = arith.truncf %63 : vector<8x8x8xf32> to vector<8x8x8xbf16>
    "tpu.trace_start"() <{level = 10 : i32, message = "bqk,bke->bqe"}> : () -> ()
    %cst_23 = arith.constant dense<0.000000e+00> : vector<8x8x8xf32>
    %67 = tpu.matmul %66, %57, %cst_23 {dimension_numbers = #tpu.dot_dimension_numbers<[2], [1], [1], [2], [0, 0, 0, 1, 1, 2], [0], [0]>} : vector<8x8x8xbf16>, vector<8x8x8xbf16>, vector<8x8x8xf32> -> vector<8x8x8xf32>
    "tpu.trace_stop"() : () -> ()
    %68 = tpu.reciprocal %65 {approx = true} : vector<8x8x1xf32> -> vector<8x8x1xf32>
    %69 = vector.broadcast %68 : vector<8x8x1xf32> to vector<8x8x8xf32>
    %70 = arith.mulf %67, %69 : vector<8x8x8xf32>
    %71 = vector.extract_strided_slice %70 {offsets = [0, 0, 0], sizes = [2, 8, 8], strides = [1, 1, 1]} : vector<8x8x8xf32> to vector<2x8x8xf32>
    %72 = vector.extract_strided_slice %70 {offsets = [2, 0, 0], sizes = [2, 8, 8], strides = [1, 1, 1]} : vector<8x8x8xf32> to vector<2x8x8xf32>
    %73 = vector.extract_strided_slice %70 {offsets = [4, 0, 0], sizes = [2, 8, 8], strides = [1, 1, 1]} : vector<8x8x8xf32> to vector<2x8x8xf32>
    %74 = vector.extract_strided_slice %70 {offsets = [6, 0, 0], sizes = [2, 8, 8], strides = [1, 1, 1]} : vector<8x8x8xf32> to vector<2x8x8xf32>
    %75 = tpu.concatenate %71, %72, %73, %74 in 2 : vector<2x8x8xf32>, vector<2x8x8xf32>, vector<2x8x8xf32>, vector<2x8x8xf32> -> vector<2x8x32xf32>
    %76 = vector.shape_cast %75 : vector<2x8x32xf32> to vector<16x32xf32>
    %77 = arith.truncf %76 : vector<16x32xf32> to vector<16x32xbf16>
    %c0_24 = arith.constant 0 : index
    %c0_25 = arith.constant 0 : index
    %c0_26 = arith.constant 0 : index
    %78 = vector.load %arg7[%c0_24, %c0_25, %c0_26] : memref<1x32x32xbf16, #tpu.memory_space<vmem>>, vector<1x32x32xbf16>
    %79 = vector.shape_cast %78 : vector<1x32x32xbf16> to vector<32x32xbf16>
    %cst_27 = arith.constant dense<0.000000e+00> : vector<16x32xf32>
    %80 = tpu.matmul %77, %79, %cst_27 {dimension_numbers = #tpu.dot_dimension_numbers<[1], [0], [0], [1], [0, 0, 1, 1], [], []>} : vector<16x32xbf16>, vector<32x32xbf16>, vector<16x32xf32> -> vector<16x32xf32>
    %c0_28 = arith.constant 0 : index
    %c0_29 = arith.constant 0 : index
    %c0_30 = arith.constant 0 : index
    %81 = vector.load %arg8[%c0_28, %c0_29, %c0_30] : memref<1x1x32xf32, #tpu.memory_space<vmem>>, vector<1x1x32xf32>
    %82 = vector.shape_cast %81 : vector<1x1x32xf32> to vector<1x32xf32>
    %83 = vector.broadcast %82 : vector<1x32xf32> to vector<16x32xf32>
    %84 = arith.addf %80, %83 : vector<16x32xf32>
    %85 = arith.addf %84, %4 : vector<16x32xf32>
    %c0_31 = arith.constant 0 : index
    %c0_32 = arith.constant 0 : index
    %c0_33 = arith.constant 0 : index
    %86 = vector.load %arg9[%c0_31, %c0_32, %c0_33] : memref<1x1x32xf32, #tpu.memory_space<vmem>>, vector<1x1x32xf32>
    %87 = vector.shape_cast %86 : vector<1x1x32xf32> to vector<1x32xf32>
    %c0_34 = arith.constant 0 : index
    %c0_35 = arith.constant 0 : index
    %c0_36 = arith.constant 0 : index
    %88 = vector.load %arg10[%c0_34, %c0_35, %c0_36] : memref<1x1x32xf32, #tpu.memory_space<vmem>>, vector<1x1x32xf32>
    %89 = vector.shape_cast %88 : vector<1x1x32xf32> to vector<1x32xf32>
    %cst_37 = arith.constant dense<0.000000e+00> : vector<16xf32>
    %90 = vector.multi_reduction <add>, %85, %cst_37 [1] : vector<16x32xf32> to vector<16xf32>
    %91 = vector.shape_cast %90 : vector<16xf32> to vector<16x1xf32>
    %cst_38 = arith.constant 3.200000e+01 : f32
    %92 = vector.broadcast %cst_38 : f32 to vector<16x1xf32>
    %93 = arith.divf %91, %92 : vector<16x1xf32>
    %94 = vector.broadcast %93 : vector<16x1xf32> to vector<16x32xf32>
    %95 = arith.subf %85, %94 : vector<16x32xf32>
    %96 = arith.mulf %95, %95 : vector<16x32xf32>
    %cst_39 = arith.constant dense<0.000000e+00> : vector<16xf32>
    %97 = vector.multi_reduction <add>, %96, %cst_39 [1] : vector<16x32xf32> to vector<16xf32>
    %98 = vector.shape_cast %97 : vector<16xf32> to vector<16x1xf32>
    %cst_40 = arith.constant 3.200000e+01 : f32
    %99 = vector.broadcast %cst_40 : f32 to vector<16x1xf32>
    %100 = arith.divf %98, %99 : vector<16x1xf32>
    %101 = vector.broadcast %93 : vector<16x1xf32> to vector<16x32xf32>
    %102 = arith.subf %85, %101 : vector<16x32xf32>
    %cst_41 = arith.constant 9.99999997E-7 : f32
    %103 = vector.broadcast %cst_41 : f32 to vector<16x1xf32>
    %104 = arith.addf %100, %103 : vector<16x1xf32>
    %105 = math.rsqrt %104 : vector<16x1xf32>
    %106 = vector.broadcast %105 : vector<16x1xf32> to vector<16x32xf32>
    %107 = arith.mulf %102, %106 : vector<16x32xf32>
    %108 = vector.broadcast %87 : vector<1x32xf32> to vector<16x32xf32>
    %109 = arith.mulf %107, %108 : vector<16x32xf32>
    %110 = vector.broadcast %89 : vector<1x32xf32> to vector<16x32xf32>
    %111 = arith.addf %109, %110 : vector<16x32xf32>
    %112 = arith.truncf %111 : vector<16x32xf32> to vector<16x32xbf16>
    %c0_42 = arith.constant 0 : index
    %c0_43 = arith.constant 0 : index
    %c0_44 = arith.constant 0 : index
    %113 = vector.load %arg11[%c0_42, %c0_43, %c0_44] : memref<1x32x128xbf16, #tpu.memory_space<vmem>>, vector<1x32x128xbf16>
    %114 = vector.shape_cast %113 : vector<1x32x128xbf16> to vector<32x128xbf16>
    %cst_45 = arith.constant dense<0.000000e+00> : vector<16x128xf32>
    %115 = tpu.matmul %112, %114, %cst_45 {dimension_numbers = #tpu.dot_dimension_numbers<[1], [0], [0], [1], [0, 0, 1, 1], [], []>} : vector<16x32xbf16>, vector<32x128xbf16>, vector<16x128xf32> -> vector<16x128xf32>
    %c0_46 = arith.constant 0 : index
    %c0_47 = arith.constant 0 : index
    %c0_48 = arith.constant 0 : index
    %116 = vector.load %arg12[%c0_46, %c0_47, %c0_48] : memref<1x1x128xf32, #tpu.memory_space<vmem>>, vector<1x1x128xf32>
    %117 = vector.shape_cast %116 : vector<1x1x128xf32> to vector<1x128xf32>
    %118 = vector.broadcast %117 : vector<1x128xf32> to vector<16x128xf32>
    %119 = arith.addf %115, %118 : vector<16x128xf32>
    %cst_49 = arith.constant 5.000000e-01 : f32
    %120 = vector.broadcast %cst_49 : f32 to vector<16x128xf32>
    %121 = arith.mulf %120, %119 : vector<16x128xf32>
    %cst_50 = arith.constant 4.471500e-02 : f32
    %122 = vector.broadcast %cst_50 : f32 to vector<16x128xf32>
    %123 = arith.mulf %122, %119 : vector<16x128xf32>
    %124 = arith.mulf %123, %119 : vector<16x128xf32>
    %125 = arith.mulf %124, %119 : vector<16x128xf32>
    %126 = arith.addf %119, %125 : vector<16x128xf32>
    %cst_51 = arith.constant 0.797884583 : f32
    %127 = vector.broadcast %cst_51 : f32 to vector<16x128xf32>
    %128 = arith.mulf %127, %126 : vector<16x128xf32>
    %129 = math.tanh %128 : vector<16x128xf32>
    %cst_52 = arith.constant 1.000000e+00 : f32
    %130 = vector.broadcast %cst_52 : f32 to vector<16x128xf32>
    %131 = arith.addf %130, %129 : vector<16x128xf32>
    %132 = arith.mulf %121, %131 : vector<16x128xf32>
    %133 = arith.truncf %132 : vector<16x128xf32> to vector<16x128xbf16>
    %c0_53 = arith.constant 0 : index
    %c0_54 = arith.constant 0 : index
    %c0_55 = arith.constant 0 : index
    %134 = vector.load %arg13[%c0_53, %c0_54, %c0_55] : memref<1x128x32xbf16, #tpu.memory_space<vmem>>, vector<1x128x32xbf16>
    %135 = vector.shape_cast %134 : vector<1x128x32xbf16> to vector<128x32xbf16>
    %cst_56 = arith.constant dense<0.000000e+00> : vector<16x32xf32>
    %136 = tpu.matmul %133, %135, %cst_56 {dimension_numbers = #tpu.dot_dimension_numbers<[1], [0], [0], [1], [0, 0, 1, 1], [], []>} : vector<16x128xbf16>, vector<128x32xbf16>, vector<16x32xf32> -> vector<16x32xf32>
    %c0_57 = arith.constant 0 : index
    %c0_58 = arith.constant 0 : index
    %c0_59 = arith.constant 0 : index
    %137 = vector.load %arg14[%c0_57, %c0_58, %c0_59] : memref<1x1x32xf32, #tpu.memory_space<vmem>>, vector<1x1x32xf32>
    %138 = vector.shape_cast %137 : vector<1x1x32xf32> to vector<1x32xf32>
    %139 = vector.broadcast %138 : vector<1x32xf32> to vector<16x32xf32>
    %140 = arith.addf %136, %139 : vector<16x32xf32>
    %141 = arith.addf %140, %85 : vector<16x32xf32>
    %142 = vector.shape_cast %141 : vector<16x32xf32> to vector<2x8x32xf32>
    %c0_60 = arith.constant 0 : index
    %c0_61 = arith.constant 0 : index
    %c0_62 = arith.constant 0 : index
    %143 = vector.load %arg16[%c0_60, %c0_61, %c0_62] : memref<2x8x32xf32, #tpu.memory_space<vmem>>, vector<2x8x32xf32>
    tpu.vector_store %arg16[%c0_60, %c0_61, %c0_62], %142 {strides = array<i32>} : memref<2x8x32xf32, #tpu.memory_space<vmem>>, vector<2x8x32xf32>,
    %c1_i32 = arith.constant 1 : i32
    %144 = arith.cmpi eq, %arg1, %c1_i32 : i32
    %145 = arith.extui %144 : i1 to i32
    %c0_i32_63 = arith.constant 0 : i32
    %146 = arith.cmpi ne, %145, %c0_i32_63 : i32
    scf.if %146 {
      %c0_64 = arith.constant 0 : index
      %c0_65 = arith.constant 0 : index
      %c0_66 = arith.constant 0 : index
      %147 = vector.load %arg15[%c0_64, %c0_65, %c0_66] : memref<2x8x32xf32, #tpu.memory_space<vmem>>, vector<2x8x32xf32>
      tpu.vector_store %arg15[%c0_64, %c0_65, %c0_66], %142 {strides = array<i32>} : memref<2x8x32xf32, #tpu.memory_space<vmem>>, vector<2x8x32xf32>,
    } else {
    }
    return
  }
  func.func @transform_0(%arg0: i32, %arg1: i32) -> (i32, i32, i32) {
    %c0_i32 = arith.constant 0 : i32
    %c0_i32_0 = arith.constant 0 : i32
    %c0_i32_1 = arith.constant 0 : i32
    return %arg0, %c0_i32, %c0_i32_0 : i32, i32, i32
  }
  func.func @transform_1(%arg0: i32, %arg1: i32) -> (i32, i32, i32) {
    %c0_i32 = arith.constant 0 : i32
    %c0_i32_0 = arith.constant 0 : i32
    %c0_i32_1 = arith.constant 0 : i32
    return %arg1, %c0_i32, %c0_i32_0 : i32, i32, i32
  }
  func.func @transform_2(%arg0: i32, %arg1: i32) -> (i32, i32, i32) {
    %c0_i32 = arith.constant 0 : i32
    %c0_i32_0 = arith.constant 0 : i32
    %c0_i32_1 = arith.constant 0 : i32
    return %arg1, %c0_i32, %c0_i32_0 : i32, i32, i32
  }
  func.func @transform_3(%arg0: i32, %arg1: i32) -> (i32, i32, i32) {
    %c0_i32 = arith.constant 0 : i32
    %c0_i32_0 = arith.constant 0 : i32
    %c0_i32_1 = arith.constant 0 : i32
    return %arg1, %c0_i32, %c0_i32_0 : i32, i32, i32
  }
  func.func @transform_4(%arg0: i32, %arg1: i32) -> (i32, i32, i32) {
    %c0_i32 = arith.constant 0 : i32
    %c0_i32_0 = arith.constant 0 : i32
    %c0_i32_1 = arith.constant 0 : i32
    return %arg1, %c0_i32, %c0_i32_0 : i32, i32, i32
  }
  func.func @transform_5(%arg0: i32, %arg1: i32) -> (i32, i32, i32) {
    %c0_i32 = arith.constant 0 : i32
    %c0_i32_0 = arith.constant 0 : i32
    %c0_i32_1 = arith.constant 0 : i32
    return %arg1, %c0_i32, %c0_i32_0 : i32, i32, i32
  }
  func.func @transform_6(%arg0: i32, %arg1: i32) -> (i32, i32, i32) {
    %c0_i32 = arith.constant 0 : i32
    %c0_i32_0 = arith.constant 0 : i32
    %c0_i32_1 = arith.constant 0 : i32
    return %arg1, %c0_i32, %c0_i32_0 : i32, i32, i32
  }
  func.func @transform_7(%arg0: i32, %arg1: i32) -> (i32, i32, i32) {
    %c0_i32 = arith.constant 0 : i32
    %c0_i32_0 = arith.constant 0 : i32
    %c0_i32_1 = arith.constant 0 : i32
    return %arg1, %c0_i32, %c0_i32_0 : i32, i32, i32
  }
  func.func @transform_8(%arg0: i32, %arg1: i32) -> (i32, i32, i32) {
    %c0_i32 = arith.constant 0 : i32
    %c0_i32_0 = arith.constant 0 : i32
    %c0_i32_1 = arith.constant 0 : i32
    return %arg1, %c0_i32, %c0_i32_0 : i32, i32, i32
  }
  func.func @transform_9(%arg0: i32, %arg1: i32) -> (i32, i32, i32) {
    %c0_i32 = arith.constant 0 : i32
    %c0_i32_0 = arith.constant 0 : i32
    %c0_i32_1 = arith.constant 0 : i32
    return %arg1, %c0_i32, %c0_i32_0 : i32, i32, i32
  }
  func.func @transform_10(%arg0: i32, %arg1: i32) -> (i32, i32, i32) {
    %c0_i32 = arith.constant 0 : i32
    %c0_i32_0 = arith.constant 0 : i32
    %c0_i32_1 = arith.constant 0 : i32
    return %arg1, %c0_i32, %c0_i32_0 : i32, i32, i32
  }
  func.func @transform_11(%arg0: i32, %arg1: i32) -> (i32, i32, i32) {
    %c0_i32 = arith.constant 0 : i32
    %c0_i32_0 = arith.constant 0 : i32
    %c0_i32_1 = arith.constant 0 : i32
    return %arg1, %c0_i32, %c0_i32_0 : i32, i32, i32
  }
  func.func @transform_12(%arg0: i32, %arg1: i32) -> (i32, i32, i32) {
    %c0_i32 = arith.constant 0 : i32
    %c0_i32_0 = arith.constant 0 : i32
    %c0_i32_1 = arith.constant 0 : i32
    return %arg1, %c0_i32, %c0_i32_0 : i32, i32, i32
  }
  func.func @transform_13(%arg0: i32, %arg1: i32) -> (i32, i32, i32) {
    %c0_i32 = arith.constant 0 : i32
    %c0_i32_0 = arith.constant 0 : i32
    %c0_i32_1 = arith.constant 0 : i32
    return %arg0, %c0_i32, %c0_i32_0 : i32, i32, i32
  }
}

</mosaic_0001>

<llo_original>
// kernel: tpu_custom_call.1
$region0: #{tpu_custom_call.1}
  #allocation0 [shape = 'u32[]', space=smem, size = 0x4, offset = 0x4, fixed_abs, tag = 'smem constant byte address 0x4 - core index']
  #allocation1 [shape = 'u32[144,128]{1,0:T(1,128)}', space=vmem, size = 0x12000, scoped, tag = 'internal scratch']
  #allocation2 [shape = 'f32[2,8,32]{2,1,0:T(8,128)}', space=vmem, size = 0x2000, scoped, tag = 'scratch operand']
  %s0 = inlined_call_operand.vmem [shape: f32[2,8,32], index: 0, kind: input, shape index: {}]
  %s1 = inlined_call_operand.vmem [shape: f32[2,1,32], index: 1, kind: input, shape index: {}]
  %s2 = inlined_call_operand.vmem [shape: f32[2,1,32], index: 2, kind: input, shape index: {}]
  %s3 = inlined_call_operand.vmem [shape: bf16[2,32,96], index: 3, kind: input, shape index: {}]
  %s4 = inlined_call_operand.vmem [shape: f32[2,1,96], index: 4, kind: input, shape index: {}]
  %s5 = inlined_call_operand.vmem [shape: bf16[2,32,32], index: 5, kind: input, shape index: {}]
  %s6 = inlined_call_operand.vmem [shape: f32[2,1,32], index: 6, kind: input, shape index: {}]
  %s7 = inlined_call_operand.vmem [shape: f32[2,1,32], index: 7, kind: input, shape index: {}]
  %s8 = inlined_call_operand.vmem [shape: f32[2,1,32], index: 8, kind: input, shape index: {}]
  %s9 = inlined_call_operand.vmem [shape: bf16[2,32,128], index: 9, kind: input, shape index: {}]
  %s10 = inlined_call_operand.vmem [shape: f32[2,1,128], index: 10, kind: input, shape index: {}]
  %s11 = inlined_call_operand.vmem [shape: bf16[2,128,32], index: 11, kind: input, shape index: {}]
  %s12 = inlined_call_operand.vmem [shape: f32[2,1,32], index: 12, kind: input, shape index: {}]
  %s13 = inlined_call_operand.hbm [shape: f32[2,8,32], index: 13, kind: output, shape index: {}]
  %s14 = sld [smem:[#allocation0]]
  $region93: #{tpu_custom_call.1} parent=0
    _
  %s16 = ssub.s32 1, %s14
  %s17 = scalar_select 0, %s16, %s14
  $region1: #{tpu_custom_call.1} parent=0
    #allocation3 [shape = 'u8[8192]{0}', space=vmem, size = 0x2000, scoped, tag = 'output window, operand 0, single buffered']
    #allocation4 [shape = 's32[2]{0}', space=sflag, size = 0x8, scoped, tag = 'scoped memory for tpu_custom_call.1']
    %18 = vsyncpa [#allocation4], 0
    loop: start=0, step=1, limit=4
    $region2: #{tpu_custom_call.1} parent=1 // loop_pre_header
      _
    $region3: #{tpu_custom_call.1} parent=1 // loop_header
      %s20 = sphi 0, %s24
      %p21 = scmp.ge.s32.totalorder %s20, 4
      %s27 = sphi 0, %s39
      %s28 = sphi 0, %s35
      %s29 = sphi 0, %s27
      %s30 = sphi 0, %s28
      %s31 = sphi 0, %s29
      %s32 = sphi 0, %s30
      %s42 = sphi 0, %s44
      %s45 = sphi 0, %s42
      %s46 = sphi 0, %s45
      %s62 = sphi 0, %s46
      %s68 = sphi 0, %s70
      %s71 = sphi 0, %s68
      %s72 = sphi 0, %s71
      %s88 = sphi 0, %s72
      %s94 = sphi 0, %s96
      %s97 = sphi 0, %s94
      %s98 = sphi 0, %s97
      %s114 = sphi 0, %s98
      %s120 = sphi 0, %s122
      %s123 = sphi 0, %s120
      %s124 = sphi 0, %s123
      %s140 = sphi 0, %s124
      %s146 = sphi 0, %s148
      %s149 = sphi 0, %s146
      %s150 = sphi 0, %s149
      %s166 = sphi 0, %s150
      %s172 = sphi 0, %s174
      %s175 = sphi 0, %s172
      %s176 = sphi 0, %s175
      %s192 = sphi 0, %s176
      %s198 = sphi 0, %s200
      %s201 = sphi 0, %s198
      %s202 = sphi 0, %s201
      %s218 = sphi 0, %s202
      %s224 = sphi 0, %s226
      %s227 = sphi 0, %s224
      %s228 = sphi 0, %s227
      %s244 = sphi 0, %s228
      %s250 = sphi 0, %s252
      %s253 = sphi 0, %s250
      %s254 = sphi 0, %s253
      %s270 = sphi 0, %s254
      %s276 = sphi 0, %s278
      %s279 = sphi 0, %s276
      %s280 = sphi 0, %s279
      %s296 = sphi 0, %s280
      %s302 = sphi 0, %s304
      %s305 = sphi 0, %s302
      %s306 = sphi 0, %s305
      %s322 = sphi 0, %s306
      %s328 = sphi 0, %s330
      %s331 = sphi 0, %s328
      %s332 = sphi 0, %s331
      %s348 = sphi 0, %s332
      %s354 = sphi 0, %s356
      %s357 = sphi 0, %s354
      %s358 = sphi 0, %s357
      %s374 = sphi 0, %s358
      %s380 = sphi 0, %s382
      %s383 = sphi 0, %s380
      %s384 = sphi 0, %s383
      %s400 = sphi 0, %s384
    $region4: #{tpu_custom_call.1} parent=1 // loop_header_branch
      %23 = sbr.rel (%p21) target = $region8
    $region5: #{tpu_custom_call.1} parent=1 // loop_body
      %s25 = ssub.s32 %s20, 1
      %s26 = ssub.s32 %s20, 2
      %s33 = sadd.s32 1, %s28
      %p34 = scmp.ge.s32.totalorder %s33, 2
      %s35 = scalar_select %p34, 0, %s33
      %s36 = sadd.s32 1, %s27
      %s37 = scalar_select %p34, %s36, %s27
      %p38 = scmp.ge.s32.totalorder %s37, 1
      %s39 = scalar_select %p38, 0, %s37
      %s40 = ssub.s32 %s27, %s39
      %p41 = scmp.eq.s32.totalorder %s40, 0
      %s43 = sadd.s32 %s42, 1
      %s44 = scalar_select %p41, %s42, %s43
      %p47 = pneg %p41
      %p48 = scmp.eq.s32.totalorder %s20, 1
      %p49 = por %p47, %p48
      %p50 = scmp.ne.s32.totalorder %s42, %s45
      %p51 = scmp.eq.s32.totalorder %s20, 0
      %p52 = por %p50, %p51
      %p53 = scmp.ne.s32.totalorder %s42, %s45
      %p54 = scmp.eq.s32.totalorder %s25, 1
      %p55 = por %p53, %p54
      %p56 = scmp.ne.s32.totalorder %s45, %s46
      %p57 = scmp.eq.s32.totalorder %s25, 0
      %p58 = por %p56, %p57
      %p59 = scmp.ne.s32.totalorder %s45, %s46
      %p60 = scmp.eq.s32.totalorder %s26, 1
      %p61 = por %p59, %p60
      %p63 = scmp.ne.s32.totalorder %s46, %s62
      %p64 = scmp.eq.s32.totalorder %s26, 0
      %p65 = por %p63, %p64
      %s66 = ssub.s32 %s28, %s35
      %p67 = scmp.eq.s32.totalorder %s66, 0
      %s69 = sadd.s32 %s68, 1
      %s70 = scalar_select %p67, %s68, %s69
      %p73 = pneg %p67
      %p74 = scmp.eq.s32.totalorder %s20, 1
      %p75 = por %p73, %p74
      %p76 = scmp.ne.s32.totalorder %s68, %s71
      %p77 = scmp.eq.s32.totalorder %s20, 0
      %p78 = por %p76, %p77
      %p79 = scmp.ne.s32.totalorder %s68, %s71
      %p80 = scmp.eq.s32.totalorder %s25, 1
      %p81 = por %p79, %p80
      %p82 = scmp.ne.s32.totalorder %s71, %s72
      %p83 = scmp.eq.s32.totalorder %s25, 0
      %p84 = por %p82, %p83
      %p85 = scmp.ne.s32.totalorder %s71, %s72
      %p86 = scmp.eq.s32.totalorder %s26, 1
      %p87 = por %p85, %p86
      %p89 = scmp.ne.s32.totalorder %s72, %s88
      %p90 = scmp.eq.s32.totalorder %s26, 0
      %p91 = por %p89, %p90
      %s92 = ssub.s32 %s28, %s35
      %p93 = scmp.eq.s32.totalorder %s92, 0
      %s95 = sadd.s32 %s94, 1
      %s96 = scalar_select %p93, %s94, %s95
      %p99 = pneg %p93
      %p100 = scmp.eq.s32.totalorder %s20, 1
      %p101 = por %p99, %p100
      %p102 = scmp.ne.s32.totalorder %s94, %s97
      %p103 = scmp.eq.s32.totalorder %s20, 0
      %p104 = por %p102, %p103
      %p105 = scmp.ne.s32.totalorder %s94, %s97
      %p106 = scmp.eq.s32.totalorder %s25, 1
      %p107 = por %p105, %p106
      %p108 = scmp.ne.s32.totalorder %s97, %s98
      %p109 = scmp.eq.s32.totalorder %s25, 0
      %p110 = por %p108, %p109
      %p111 = scmp.ne.s32.totalorder %s97, %s98
      %p112 = scmp.eq.s32.totalorder %s26, 1
      %p113 = por %p111, %p112
      %p115 = scmp.ne.s32.totalorder %s98, %s114
      %p116 = scmp.eq.s32.totalorder %s26, 0
      %p117 = por %p115, %p116
      %s118 = ssub.s32 %s28, %s35
      %p119 = scmp.eq.s32.totalorder %s118, 0
      %s121 = sadd.s32 %s120, 1
      %s122 = scalar_select %p119, %s120, %s121
      %p125 = pneg %p119
      %p126 = scmp.eq.s32.totalorder %s20, 1
      %p127 = por %p125, %p126
      %p128 = scmp.ne.s32.totalorder %s120, %s123
      %p129 = scmp.eq.s32.totalorder %s20, 0
      %p130 = por %p128, %p129
      %p131 = scmp.ne.s32.totalorder %s120, %s123
      %p132 = scmp.eq.s32.totalorder %s25, 1
      %p133 = por %p131, %p132
      %p134 = scmp.ne.s32.totalorder %s123, %s124
      %p135 = scmp.eq.s32.totalorder %s25, 0
      %p136 = por %p134, %p135
      %p137 = scmp.ne.s32.totalorder %s123, %s124
      %p138 = scmp.eq.s32.totalorder %s26, 1
      %p139 = por %p137, %p138
      %p141 = scmp.ne.s32.totalorder %s124, %s140
      %p142 = scmp.eq.s32.totalorder %s26, 0
      %p143 = por %p141, %p142
      %s144 = ssub.s32 %s28, %s35
      %p145 = scmp.eq.s32.totalorder %s144, 0
      %s147 = sadd.s32 %s146, 1
      %s148 = scalar_select %p145, %s146, %s147
      %p151 = pneg %p145
      %p152 = scmp.eq.s32.totalorder %s20, 1
      %p153 = por %p151, %p152
      %p154 = scmp.ne.s32.totalorder %s146, %s149
      %p155 = scmp.eq.s32.totalorder %s20, 0
      %p156 = por %p154, %p155
      %p157 = scmp.ne.s32.totalorder %s146, %s149
      %p158 = scmp.eq.s32.totalorder %s25, 1
      %p159 = por %p157, %p158
      %p160 = scmp.ne.s32.totalorder %s149, %s150
      %p161 = scmp.eq.s32.totalorder %s25, 0
      %p162 = por %p160, %p161
      %p163 = scmp.ne.s32.totalorder %s149, %s150
      %p164 = scmp.eq.s32.totalorder %s26, 1
      %p165 = por %p163, %p164
      %p167 = scmp.ne.s32.totalorder %s150, %s166
      %p168 = scmp.eq.s32.totalorder %s26, 0
      %p169 = por %p167, %p168
      %s170 = ssub.s32 %s28, %s35
      %p171 = scmp.eq.s32.totalorder %s170, 0
      %s173 = sadd.s32 %s172, 1
      %s174 = scalar_select %p171, %s172, %s173
      %p177 = pneg %p171
      %p178 = scmp.eq.s32.totalorder %s20, 1
      %p179 = por %p177, %p178
      %p180 = scmp.ne.s32.totalorder %s172, %s175
      %p181 = scmp.eq.s32.totalorder %s20, 0
      %p182 = por %p180, %p181
      %p183 = scmp.ne.s32.totalorder %s172, %s175
      %p184 = scmp.eq.s32.totalorder %s25, 1
      %p185 = por %p183, %p184
      %p186 = scmp.ne.s32.totalorder %s175, %s176
      %p187 = scmp.eq.s32.totalorder %s25, 0
      %p188 = por %p186, %p187
      %p189 = scmp.ne.s32.totalorder %s175, %s176
      %p190 = scmp.eq.s32.totalorder %s26, 1
      %p191 = por %p189, %p190
      %p193 = scmp.ne.s32.totalorder %s176, %s192
      %p194 = scmp.eq.s32.totalorder %s26, 0
      %p195 = por %p193, %p194
      %s196 = ssub.s32 %s28, %s35
      %p197 = scmp.eq.s32.totalorder %s196, 0
      %s199 = sadd.s32 %s198, 1
      %s200 = scalar_select %p197, %s198, %s199
      %p203 = pneg %p197
      %p204 = scmp.eq.s32.totalorder %s20, 1
      %p205 = por %p203, %p204
      %p206 = scmp.ne.s32.totalorder %s198, %s201
      %p207 = scmp.eq.s32.totalorder %s20, 0
      %p208 = por %p206, %p207
      %p209 = scmp.ne.s32.totalorder %s198, %s201
      %p210 = scmp.eq.s32.totalorder %s25, 1
      %p211 = por %p209, %p210
      %p212 = scmp.ne.s32.totalorder %s201, %s202
      %p213 = scmp.eq.s32.totalorder %s25, 0
      %p214 = por %p212, %p213
      %p215 = scmp.ne.s32.totalorder %s201, %s202
      %p216 = scmp.eq.s32.totalorder %s26, 1
      %p217 = por %p215, %p216
      %p219 = scmp.ne.s32.totalorder %s202, %s218
      %p220 = scmp.eq.s32.totalorder %s26, 0
      %p221 = por %p219, %p220
      %s222 = ssub.s32 %s28, %s35
      %p223 = scmp.eq.s32.totalorder %s222, 0
      %s225 = sadd.s32 %s224, 1
      %s226 = scalar_select %p223, %s224, %s225
      %p229 = pneg %p223
      %p230 = scmp.eq.s32.totalorder %s20, 1
      %p231 = por %p229, %p230
      %p232 = scmp.ne.s32.totalorder %s224, %s227
      %p233 = scmp.eq.s32.totalorder %s20, 0
      %p234 = por %p232, %p233
      %p235 = scmp.ne.s32.totalorder %s224, %s227
      %p236 = scmp.eq.s32.totalorder %s25, 1
      %p237 = por %p235, %p236
      %p238 = scmp.ne.s32.totalorder %s227, %s228
      %p239 = scmp.eq.s32.totalorder %s25, 0
      %p240 = por %p238, %p239
      %p241 = scmp.ne.s32.totalorder %s227, %s228
      %p242 = scmp.eq.s32.totalorder %s26, 1
      %p243 = por %p241, %p242
      %p245 = scmp.ne.s32.totalorder %s228, %s244
      %p246 = scmp.eq.s32.totalorder %s26, 0
      %p247 = por %p245, %p246
      %s248 = ssub.s32 %s28, %s35
      %p249 = scmp.eq.s32.totalorder %s248, 0
      %s251 = sadd.s32 %s250, 1
      %s252 = scalar_select %p249, %s250, %s251
      %p255 = pneg %p249
      %p256 = scmp.eq.s32.totalorder %s20, 1
      %p257 = por %p255, %p256
      %p258 = scmp.ne.s32.totalorder %s250, %s253
      %p259 = scmp.eq.s32.totalorder %s20, 0
      %p260 = por %p258, %p259
      %p261 = scmp.ne.s32.totalorder %s250, %s253
      %p262 = scmp.eq.s32.totalorder %s25, 1
      %p263 = por %p261, %p262
      %p264 = scmp.ne.s32.totalorder %s253, %s254
      %p265 = scmp.eq.s32.totalorder %s25, 0
      %p266 = por %p264, %p265
      %p267 = scmp.ne.s32.totalorder %s253, %s254
      %p268 = scmp.eq.s32.totalorder %s26, 1
      %p269 = por %p267, %p268
      %p271 = scmp.ne.s32.totalorder %s254, %s270
      %p272 = scmp.eq.s32.totalorder %s26, 0
      %p273 = por %p271, %p272
      %s274 = ssub.s32 %s28, %s35
      %p275 = scmp.eq.s32.totalorder %s274, 0
      %s277 = sadd.s32 %s276, 1
      %s278 = scalar_select %p275, %s276, %s277
      %p281 = pneg %p275
      %p282 = scmp.eq.s32.totalorder %s20, 1
      %p283 = por %p281, %p282
      %p284 = scmp.ne.s32.totalorder %s276, %s279
      %p285 = scmp.eq.s32.totalorder %s20, 0
      %p286 = por %p284, %p285
      %p287 = scmp.ne.s32.totalorder %s276, %s279
      %p288 = scmp.eq.s32.totalorder %s25, 1
      %p289 = por %p287, %p288
      %p290 = scmp.ne.s32.totalorder %s279, %s280
      %p291 = scmp.eq.s32.totalorder %s25, 0
      %p292 = por %p290, %p291
      %p293 = scmp.ne.s32.totalorder %s279, %s280
      %p294 = scmp.eq.s32.totalorder %s26, 1
      %p295 = por %p293, %p294
      %p297 = scmp.ne.s32.totalorder %s280, %s296
      %p298 = scmp.eq.s32.totalorder %s26, 0
      %p299 = por %p297, %p298
      %s300 = ssub.s32 %s28, %s35
      %p301 = scmp.eq.s32.totalorder %s300, 0
      %s303 = sadd.s32 %s302, 1
      %s304 = scalar_select %p301, %s302, %s303
      %p307 = pneg %p301
      %p308 = scmp.eq.s32.totalorder %s20, 1
      %p309 = por %p307, %p308
      %p310 = scmp.ne.s32.totalorder %s302, %s305
      %p311 = scmp.eq.s32.totalorder %s20, 0
      %p312 = por %p310, %p311
      %p313 = scmp.ne.s32.totalorder %s302, %s305
      %p314 = scmp.eq.s32.totalorder %s25, 1
      %p315 = por %p313, %p314
      %p316 = scmp.ne.s32.totalorder %s305, %s306
      %p317 = scmp.eq.s32.totalorder %s25, 0
      %p318 = por %p316, %p317
      %p319 = scmp.ne.s32.totalorder %s305, %s306
      %p320 = scmp.eq.s32.totalorder %s26, 1
      %p321 = por %p319, %p320
      %p323 = scmp.ne.s32.totalorder %s306, %s322
      %p324 = scmp.eq.s32.totalorder %s26, 0
      %p325 = por %p323, %p324
      %s326 = ssub.s32 %s28, %s35
      %p327 = scmp.eq.s32.totalorder %s326, 0
      %s329 = sadd.s32 %s328, 1
      %s330 = scalar_select %p327, %s328, %s329
      %p333 = pneg %p327
      %p334 = scmp.eq.s32.totalorder %s20, 1
      %p335 = por %p333, %p334
      %p336 = scmp.ne.s32.totalorder %s328, %s331
      %p337 = scmp.eq.s32.totalorder %s20, 0
      %p338 = por %p336, %p337
      %p339 = scmp.ne.s32.totalorder %s328, %s331
      %p340 = scmp.eq.s32.totalorder %s25, 1
      %p341 = por %p339, %p340
      %p342 = scmp.ne.s32.totalorder %s331, %s332
      %p343 = scmp.eq.s32.totalorder %s25, 0
      %p344 = por %p342, %p343
      %p345 = scmp.ne.s32.totalorder %s331, %s332
      %p346 = scmp.eq.s32.totalorder %s26, 1
      %p347 = por %p345, %p346
      %p349 = scmp.ne.s32.totalorder %s332, %s348
      %p350 = scmp.eq.s32.totalorder %s26, 0
      %p351 = por %p349, %p350
      %s352 = ssub.s32 %s28, %s35
      %p353 = scmp.eq.s32.totalorder %s352, 0
      %s355 = sadd.s32 %s354, 1
      %s356 = scalar_select %p353, %s354, %s355
      %p359 = pneg %p353
      %p360 = scmp.eq.s32.totalorder %s20, 1
      %p361 = por %p359, %p360
      %p362 = scmp.ne.s32.totalorder %s354, %s357
      %p363 = scmp.eq.s32.totalorder %s20, 0
      %p364 = por %p362, %p363
      %p365 = scmp.ne.s32.totalorder %s354, %s357
      %p366 = scmp.eq.s32.totalorder %s25, 1
      %p367 = por %p365, %p366
      %p368 = scmp.ne.s32.totalorder %s357, %s358
      %p369 = scmp.eq.s32.totalorder %s25, 0
      %p370 = por %p368, %p369
      %p371 = scmp.ne.s32.totalorder %s357, %s358
      %p372 = scmp.eq.s32.totalorder %s26, 1
      %p373 = por %p371, %p372
      %p375 = scmp.ne.s32.totalorder %s358, %s374
      %p376 = scmp.eq.s32.totalorder %s26, 0
      %p377 = por %p375, %p376
      %s378 = ssub.s32 %s27, %s39
      %p379 = scmp.eq.s32.totalorder %s378, 0
      %s381 = sadd.s32 %s380, 1
      %s382 = scalar_select %p379, %s380, %s381
      %p385 = pneg %p379
      %p386 = scmp.eq.s32.totalorder %s20, 1
      %p387 = por %p385, %p386
      %p388 = scmp.ne.s32.totalorder %s380, %s383
      %p389 = scmp.eq.s32.totalorder %s20, 0
      %p390 = por %p388, %p389
      %p391 = scmp.ne.s32.totalorder %s380, %s383
      %p392 = scmp.eq.s32.totalorder %s25, 1
      %p393 = por %p391, %p392
      %p394 = scmp.ne.s32.totalorder %s383, %s384
      %p395 = scmp.eq.s32.totalorder %s25, 0
      %p396 = por %p394, %p395
      %p397 = scmp.ne.s32.totalorder %s383, %s384
      %p398 = scmp.eq.s32.totalorder %s26, 1
      %p399 = por %p397, %p398
      %p401 = scmp.ne.s32.totalorder %s384, %s400
      %p402 = scmp.eq.s32.totalorder %s26, 0
      %p403 = por %p401, %p402
      %p404 = scmp.le.s32.totalorder 1, %s20
      %p405 = scmp.lt.s32.totalorder %s20, 3
      %p406 = pnand %p404, %p405
      %p407 = pneg %p406
      // Predicated region
      $region9: #{tpu_custom_call.1} parent=5 // pred_check
        _
      $region10: #{tpu_custom_call.1} parent=5 // pred_check_branch
        %409 = sbr.rel (%p406) target = $region12
      $region11: #{tpu_custom_call.1} parent=5 // pred_region
        %s410 = ssub.s32 %s20, 1
        // Predicated region
        $region13: #{tpu_custom_call.1} parent=11 // pred_check
          %p411 = pneg %p58
        $region14: #{tpu_custom_call.1} parent=11 // pred_check_branch
          %413 = sbr.rel (%p411) target = $region16
        $region15: #{tpu_custom_call.1} parent=11 // pred_region
          %s414 = smul.u32 2, %s29
          %p415 = scmp.lt.s32.totalorder %s414, 1
          %s416 = scalar_select %p415, %s414, 1
          %s417 = smul.addr %s416, 8
          %s418 = scalar_lea.vmem %s0, %s417
          %s419 = smul.u32 2, %s29
        $region16: #{tpu_custom_call.1} parent=11 // pred_fallthru
          _
      $region12: #{tpu_custom_call.1} parent=5 // pred_fallthru
        _
      %p420 = scmp.lt.s32.totalorder %s20, 2
      // Predicated region
      $region17: #{tpu_custom_call.1} parent=5 // pred_check
        %p421 = pneg %p420
      $region18: #{tpu_custom_call.1} parent=5 // pred_check_branch
        %423 = sbr.rel (%p421) target = $region20
      $region19: #{tpu_custom_call.1} parent=5 // pred_region
        // Predicated region
        $region21: #{tpu_custom_call.1} parent=19 // pred_check
          %p424 = pneg %p78
        $region22: #{tpu_custom_call.1} parent=19 // pred_check_branch
          %426 = sbr.rel (%p424) target = $region24
        $region23: #{tpu_custom_call.1} parent=19 // pred_region
          %p427 = scmp.lt.s32.totalorder %s28, 1
          %s428 = scalar_select %p427, %s28, 1
          %s429 = scalar_lea.vmem %s1, %s428
        $region24: #{tpu_custom_call.1} parent=19 // pred_fallthru
          _
        // Predicated region
        $region25: #{tpu_custom_call.1} parent=19 // pred_check
          %p430 = pneg %p104
        $region26: #{tpu_custom_call.1} parent=19 // pred_check_branch
          %432 = sbr.rel (%p430) target = $region28
        $region27: #{tpu_custom_call.1} parent=19 // pred_region
          %p433 = scmp.lt.s32.totalorder %s28, 1
          %s434 = scalar_select %p433, %s28, 1
          %s435 = scalar_lea.vmem %s2, %s434
        $region28: #{tpu_custom_call.1} parent=19 // pred_fallthru
          _
        // Predicated region
        $region29: #{tpu_custom_call.1} parent=19 // pred_check
          %p436 = pneg %p130
        $region30: #{tpu_custom_call.1} parent=19 // pred_check_branch
          %438 = sbr.rel (%p436) target = $region32
        $region31: #{tpu_custom_call.1} parent=19 // pred_region
          %p439 = scmp.lt.s32.totalorder %s28, 1
          %s440 = scalar_select %p439, %s28, 1
          %s441 = smul.addr %s440, 4
          %s442 = smul.addr %s441, 4
          %s443 = scalar_lea.vmem %s3, %s442
        $region32: #{tpu_custom_call.1} parent=19 // pred_fallthru
          _
        // Predicated region
        $region33: #{tpu_custom_call.1} parent=19 // pred_check
          %p444 = pneg %p156
        $region34: #{tpu_custom_call.1} parent=19 // pred_check_branch
          %446 = sbr.rel (%p444) target = $region36
        $region35: #{tpu_custom_call.1} parent=19 // pred_region
          %p447 = scmp.lt.s32.totalorder %s28, 1
          %s448 = scalar_select %p447, %s28, 1
          %s449 = scalar_lea.vmem %s4, %s448
        $region36: #{tpu_custom_call.1} parent=19 // pred_fallthru
          _
        // Predicated region
        $region37: #{tpu_custom_call.1} parent=19 // pred_check
          %p450 = pneg %p182
        $region38: #{tpu_custom_call.1} parent=19 // pred_check_branch
          %452 = sbr.rel (%p450) target = $region40
        $region39: #{tpu_custom_call.1} parent=19 // pred_region
          %p453 = scmp.lt.s32.totalorder %s28, 1
          %s454 = scalar_select %p453, %s28, 1
          %s455 = smul.addr %s454, 4
          %s456 = smul.addr %s455, 4
          %s457 = scalar_lea.vmem %s5, %s456
        $region40: #{tpu_custom_call.1} parent=19 // pred_fallthru
          _
        // Predicated region
        $region41: #{tpu_custom_call.1} parent=19 // pred_check
          %p458 = pneg %p208
        $region42: #{tpu_custom_call.1} parent=19 // pred_check_branch
          %460 = sbr.rel (%p458) target = $region44
        $region43: #{tpu_custom_call.1} parent=19 // pred_region
          %p461 = scmp.lt.s32.totalorder %s28, 1
          %s462 = scalar_select %p461, %s28, 1
          %s463 = scalar_lea.vmem %s6, %s462
        $region44: #{tpu_custom_call.1} parent=19 // pred_fallthru
          _
        // Predicated region
        $region45: #{tpu_custom_call.1} parent=19 // pred_check
          %p464 = pneg %p234
        $region46: #{tpu_custom_call.1} parent=19 // pred_check_branch
          %466 = sbr.rel (%p464) target = $region48
        $region47: #{tpu_custom_call.1} parent=19 // pred_region
          %p467 = scmp.lt.s32.totalorder %s28, 1
          %s468 = scalar_select %p467, %s28, 1
          %s469 = scalar_lea.vmem %s7, %s468
        $region48: #{tpu_custom_call.1} parent=19 // pred_fallthru
          _
        // Predicated region
        $region49: #{tpu_custom_call.1} parent=19 // pred_check
          %p470 = pneg %p260
        $region50: #{tpu_custom_call.1} parent=19 // pred_check_branch
          %472 = sbr.rel (%p470) target = $region52
        $region51: #{tpu_custom_call.1} parent=19 // pred_region
          %p473 = scmp.lt.s32.totalorder %s28, 1
          %s474 = scalar_select %p473, %s28, 1
          %s475 = scalar_lea.vmem %s8, %s474
        $region52: #{tpu_custom_call.1} parent=19 // pred_fallthru
          _
        // Predicated region
        $region53: #{tpu_custom_call.1} parent=19 // pred_check
          %p476 = pneg %p286
        $region54: #{tpu_custom_call.1} parent=19 // pred_check_branch
          %478 = sbr.rel (%p476) target = $region56
        $region55: #{tpu_custom_call.1} parent=19 // pred_region
          %p479 = scmp.lt.s32.totalorder %s28, 1
          %s480 = scalar_select %p479, %s28, 1
          %s481 = smul.addr %s480, 4
          %s482 = smul.addr %s481, 4
          %s483 = scalar_lea.vmem %s9, %s482
        $region56: #{tpu_custom_call.1} parent=19 // pred_fallthru
          _
        // Predicated region
        $region57: #{tpu_custom_call.1} parent=19 // pred_check
          %p484 = pneg %p312
        $region58: #{tpu_custom_call.1} parent=19 // pred_check_branch
          %486 = sbr.rel (%p484) target = $region60
        $region59: #{tpu_custom_call.1} parent=19 // pred_region
          %p487 = scmp.lt.s32.totalorder %s28, 1
          %s488 = scalar_select %p487, %s28, 1
          %s489 = scalar_lea.vmem %s10, %s488
        $region60: #{tpu_custom_call.1} parent=19 // pred_fallthru
          _
        // Predicated region
        $region61: #{tpu_custom_call.1} parent=19 // pred_check
          %p490 = pneg %p338
        $region62: #{tpu_custom_call.1} parent=19 // pred_check_branch
          %492 = sbr.rel (%p490) target = $region64
        $region63: #{tpu_custom_call.1} parent=19 // pred_region
          %p493 = scmp.lt.s32.totalorder %s28, 1
          %s494 = scalar_select %p493, %s28, 1
          %s495 = smul.addr %s494, 16
          %s496 = smul.addr %s495, 4
          %s497 = scalar_lea.vmem %s11, %s496
        $region64: #{tpu_custom_call.1} parent=19 // pred_fallthru
          _
        // Predicated region
        $region65: #{tpu_custom_call.1} parent=19 // pred_check
          %p498 = pneg %p364
        $region66: #{tpu_custom_call.1} parent=19 // pred_check_branch
          %500 = sbr.rel (%p498) target = $region68
        $region67: #{tpu_custom_call.1} parent=19 // pred_region
          %p501 = scmp.lt.s32.totalorder %s28, 1
          %s502 = scalar_select %p501, %s28, 1
          %s503 = scalar_lea.vmem %s12, %s502
        $region68: #{tpu_custom_call.1} parent=19 // pred_fallthru
          _
      $region20: #{tpu_custom_call.1} parent=5 // pred_fallthru
        _
      %p504 = scmp.le.s32.totalorder 1, %s20
      %p505 = scmp.lt.s32.totalorder %s20, 3
      %p506 = pnand %p504, %p505
      %p507 = pneg %p506
      // Predicated region
      $region69: #{tpu_custom_call.1} parent=5 // pred_check
        _
      $region70: #{tpu_custom_call.1} parent=5 // pred_check_branch
        %509 = sbr.rel (%p506) target = $region72
      $region71: #{tpu_custom_call.1} parent=5 // pred_region
        %s510 = ssub.s32 %s20, 1
        %s511 = smul.u32 2, %s29
        %p512 = scmp.lt.s32.totalorder %s511, 1
        %s513 = scalar_select %p512, %s511, 1
        %s514 = smul.addr %s513, 8
        %s515 = scalar_lea.vmem %s0, %s514
        %p516 = pneg %p58
        %p517 = pneg %p55
        %p518 = scmp.lt.s32.totalorder %s30, 1
        %s519 = scalar_select %p518, %s30, 1
        %s520 = scalar_lea.vmem %s1, %s519
        %p521 = pneg %p84
        %p522 = pneg %p81
        %p523 = scmp.lt.s32.totalorder %s30, 1
        %s524 = scalar_select %p523, %s30, 1
        %s525 = scalar_lea.vmem %s2, %s524
        %p526 = pneg %p110
        %p527 = pneg %p107
        %p528 = scmp.lt.s32.totalorder %s30, 1
        %s529 = scalar_select %p528, %s30, 1
        %s530 = smul.addr %s529, 4
        %s531 = smul.addr %s530, 4
        %s532 = scalar_lea.vmem %s3, %s531
        %p533 = pneg %p136
        %p534 = pneg %p133
        %p535 = scmp.lt.s32.totalorder %s30, 1
        %s536 = scalar_select %p535, %s30, 1
        %s537 = scalar_lea.vmem %s4, %s536
        %p538 = pneg %p162
        %p539 = pneg %p159
        %p540 = scmp.lt.s32.totalorder %s30, 1
        %s541 = scalar_select %p540, %s30, 1
        %s542 = smul.addr %s541, 4
        %s543 = smul.addr %s542, 4
        %s544 = scalar_lea.vmem %s5, %s543
        %p545 = pneg %p188
        %p546 = pneg %p185
        %p547 = scmp.lt.s32.totalorder %s30, 1
        %s548 = scalar_select %p547, %s30, 1
        %s549 = scalar_lea.vmem %s6, %s548
        %p550 = pneg %p214
        %p551 = pneg %p211
        %p552 = scmp.lt.s32.totalorder %s30, 1
        %s553 = scalar_select %p552, %s30, 1
        %s554 = scalar_lea.vmem %s7, %s553
        %p555 = pneg %p240
        %p556 = pneg %p237
        %p557 = scmp.lt.s32.totalorder %s30, 1
        %s558 = scalar_select %p557, %s30, 1
        %s559 = scalar_lea.vmem %s8, %s558
        %p560 = pneg %p266
        %p561 = pneg %p263
        %p562 = scmp.lt.s32.totalorder %s30, 1
        %s563 = scalar_select %p562, %s30, 1
        %s564 = smul.addr %s563, 4
        %s565 = smul.addr %s564, 4
        %s566 = scalar_lea.vmem %s9, %s565
        %p567 = pneg %p292
        %p568 = pneg %p289
        %p569 = scmp.lt.s32.totalorder %s30, 1
        %s570 = scalar_select %p569, %s30, 1
        %s571 = scalar_lea.vmem %s10, %s570
        %p572 = pneg %p318
        %p573 = pneg %p315
        %p574 = scmp.lt.s32.totalorder %s30, 1
        %s575 = scalar_select %p574, %s30, 1
        %s576 = smul.addr %s575, 16
        %s577 = smul.addr %s576, 4
        %s578 = scalar_lea.vmem %s11, %s577
        %p579 = pneg %p344
        %p580 = pneg %p341
        %p581 = scmp.lt.s32.totalorder %s30, 1
        %s582 = scalar_select %p581, %s30, 1
        %s583 = scalar_lea.vmem %s12, %s582
        %p584 = pneg %p370
        %p585 = pneg %p367
        %p586 = pneg %p396
        %p587 = pneg %p393
        %s588 = smul.u32 2, %s29
        %p589 = scmp.lt.s32.totalorder %s588, 1
        %s590 = scalar_select %p589, %s588, 1
        %s591 = smul.addr %s590, 8
        %s592 = scalar_lea.vmem %s0, %s591
        %s593 = smul.u32 2, %s29
        %p594 = scmp.lt.s32.totalorder %s30, 1
        %s595 = scalar_select %p594, %s30, 1
        %s596 = scalar_lea.vmem %s1, %s595
        %p597 = scmp.lt.s32.totalorder %s30, 1
        %s598 = scalar_select %p597, %s30, 1
        %s599 = scalar_lea.vmem %s2, %s598
        %p600 = scmp.lt.s32.totalorder %s30, 1
        %s601 = scalar_select %p600, %s30, 1
        %s602 = smul.addr %s601, 4
        %s603 = smul.addr %s602, 4
        %s604 = scalar_lea.vmem %s3, %s603
        %p605 = scmp.lt.s32.totalorder %s30, 1
        %s606 = scalar_select %p605, %s30, 1
        %s607 = scalar_lea.vmem %s4, %s606
        %p608 = scmp.lt.s32.totalorder %s30, 1
        %s609 = scalar_select %p608, %s30, 1
        %s610 = smul.addr %s609, 4
        %s611 = smul.addr %s610, 4
        %s612 = scalar_lea.vmem %s5, %s611
        %p613 = scmp.lt.s32.totalorder %s30, 1
        %s614 = scalar_select %p613, %s30, 1
        %s615 = scalar_lea.vmem %s6, %s614
        %p616 = scmp.lt.s32.totalorder %s30, 1
        %s617 = scalar_select %p616, %s30, 1
        %s618 = scalar_lea.vmem %s7, %s617
        %p619 = scmp.lt.s32.totalorder %s30, 1
        %s620 = scalar_select %p619, %s30, 1
        %s621 = scalar_lea.vmem %s8, %s620
        %p622 = scmp.lt.s32.totalorder %s30, 1
        %s623 = scalar_select %p622, %s30, 1
        %s624 = smul.addr %s623, 4
        %s625 = smul.addr %s624, 4
        %s626 = scalar_lea.vmem %s9, %s625
        %p627 = scmp.lt.s32.totalorder %s30, 1
        %s628 = scalar_select %p627, %s30, 1
        %s629 = scalar_lea.vmem %s10, %s628
        %p630 = scmp.lt.s32.totalorder %s30, 1
        %s631 = scalar_select %p630, %s30, 1
        %s632 = smul.addr %s631, 16
        %s633 = smul.addr %s632, 4
        %s634 = scalar_lea.vmem %s11, %s633
        %p635 = scmp.lt.s32.totalorder %s30, 1
        %s636 = scalar_select %p635, %s30, 1
        %s637 = scalar_lea.vmem %s12, %s636
        %s638 = smul.u32 2, %s29
        %p640 = scmp.eq.s32.totalorder %s30, 0
        // Predicated region
        $region73: #{tpu_custom_call.1} parent=71 // pred_check
          %p641 = pneg %p640
        $region74: #{tpu_custom_call.1} parent=71 // pred_check_branch
          %643 = sbr.rel (%p641) target = $region76
        $region75: #{tpu_custom_call.1} parent=71 // pred_region
          %v644 = vld [vmem:[%s592] sm:$0xff]
          %v645 = vld [vmem:[%s592 + $0x8] sm:$0xff]
          %vm646 = vcmask 261120
          %647 = vst.msk [vmem:[#allocation2] sm:$0xff] %vm646, %v644
          %648 = vst.msk [vmem:[#allocation2 + $0x8] sm:$0xff] %vm646, %v645
        $region76: #{tpu_custom_call.1} parent=71 // pred_fallthru
          _
        %v649 = vld [vmem:[#allocation2] sm:$0xff]
        %v650 = vld [vmem:[#allocation2 + $0x8] sm:$0xff]
        %v651 = vld [vmem:[%s596] sm:$0x1]
        %v652 = vld [vmem:[%s599] sm:$0x1]
        %vm653 = vcmask 261120
        %v654 = vsel %vm653, %v649, 0.0
        %655 = vadd.xlane.f32.xlu0 %v654
        %v656 = vpop.xlane.xlu0 %655
        %v657 = vsel %vm653, %v650, 0.0
        %658 = vadd.xlane.f32.xlu0 %v657
        %v659 = vpop.xlane.xlu0 %658
        %v660 = vrcp.pop 32.0
        %v661 = vmul.f32 %v656, %v660
        %v662 = vmul.f32 %v659, %v660
        %v663 = vsub.f32 %v649, %v661
        %v664 = vsub.f32 %v650, %v662
        %v665 = vmul.f32 %v663, %v663
        %v666 = vmul.f32 %v664, %v664
        %v667 = vsel %vm653, %v665, 0.0
        %668 = vadd.xlane.f32.xlu0 %v667
        %v669 = vpop.xlane.xlu0 %668
        %v670 = vsel %vm653, %v666, 0.0
        %671 = vadd.xlane.f32.xlu0 %v670
        %v672 = vpop.xlane.xlu0 %671
        %v673 = vmul.f32 %v669, %v660
        %v674 = vmul.f32 %v672, %v660
        %v675 = vadd.f32 %v673, 1e-06
        %v676 = vadd.f32 %v674, 1e-06
        %v677 = vrsqrt.pop %v675
        %v678 = vrsqrt.pop %v676
        %v679 = vmul.f32 %v663, %v677
        %v680 = vmul.f32 %v664, %v678
        %v682 = vlaneseq
        %v683 = vshrl.u32 %v682, 7
        %v684 = vsub.s32 0, %v683
        %v685 = vrot.slane %v651, %v684
        %v687 = vmul.f32 %v679, %v685
        %v688 = vmul.f32 %v680, %v685
        %v690 = vlaneseq
        %v691 = vshrl.u32 %v690, 7
        %v692 = vsub.s32 0, %v691
        %v693 = vrot.slane %v652, %v692
        %v695 = vadd.f32 %v687, %v693
        %v696 = vadd.f32 %v688, %v693
        %v697 = vpack.c.bf16 %v696, %v695
        %v698 = vld [vmem:[%s604] sm:$0xf]
        %v699 = vld [vmem:[%s604 + $0x4] sm:$0xf]
        %v700 = vld [vmem:[%s604 + $0x8] sm:$0xf]
        %v701 = vld [vmem:[%s604 + $0xc] sm:$0xf]
        %v702 = vld [vmem:[%s607] sm:$0x1]
        %v704 = vlaneseq
        %v705 = vshrl.u32 %v704, 7
        %v706 = vsub.s32 0, %v705
        %v707 = vrot.slane %v702, %v706
        %v713 = vunpack.c.l.b16 %v698
        %v714 = vunpack.c.l.b16 %v699
        %v715 = vunpack.c.l.b16 %v700
        %v716 = vunpack.c.l.b16 %v701
        %v717 = vpack.c.b16 %v714, %v713
        %v718 = vpack.c.b16 %v716, %v715
        %v722 = vsel %vm653, %v697, 0
        %724 = vmatprep.subr.bf16.mxu0 0
        %725 = vmatpush1.bf16.msra.mxu0 %v717
        %726 = vmatprep.subr.bf16.mxu0 0
        %727 = vmatpush1.bf16.msra.mxu0 %v718
        %728 = vmatprep.subr.bf16.mxu0 0
        %729 = vmatpush1.bf16.msra.mxu0 0
        %730 = vmatprep.subr.bf16.mxu0 0
        %731 = vmatpush1.bf16.msra.mxu0 0
        %732 = vmatprep.subr.bf16.mxu0 0
        %733 = vmatpush1.bf16.msra.mxu0 0
        %734 = vmatprep.subr.bf16.mxu0 0
        %735 = vmatpush1.bf16.msra.mxu0 0
        %736 = vmatprep.subr.bf16.mxu0 0
        %737 = vmatpush1.bf16.msra.mxu0 0
        %738 = vmatprep.subr.bf16.mxu0 0
        %739 = vmatpush1.bf16.msra.mxu0 0
        %740 = vmatprep.subr.bf16.mxu0 0
        %741 = vmatpush1.bf16.msra.mxu0 0
        %742 = vmatprep.subr.bf16.mxu0 0
        %743 = vmatpush1.bf16.msra.mxu0 0
        %744 = vmatprep.subr.bf16.mxu0 0
        %745 = vmatpush1.bf16.msra.mxu0 0
        %746 = vmatprep.subr.bf16.mxu0 0
        %747 = vmatpush1.bf16.msra.mxu0 0
        %748 = vmatprep.subr.bf16.mxu0 0
        %749 = vmatpush1.bf16.msra.mxu0 0
        %750 = vmatprep.subr.bf16.mxu0 0
        %751 = vmatpush1.bf16.msra.mxu0 0
        %752 = vmatprep.subr.bf16.mxu0 0
        %753 = vmatpush1.bf16.msra.mxu0 0
        %754 = vmatprep.subr.bf16.mxu0 0
        %755 = vmatpush1.bf16.msra.mxu0 0
        %756 = vmatprep.mubr.bf16.mxu0 0
        %757 = vmatmul.mubr.bf16.gmra.mrb[0].mxu0 %v722
        %v758 = vpop.f32.mrb[0].mxu0
        %v759 = vadd.f32 %v707, %v758
        %v760 = vpop.f32.mrb[0].mxu0
        %v761 = vpop.f32.mrb[0].mxu0
        %v762 = vadd.f32 %v707, %v761
        %v763 = vpop.f32.mrb[0].mxu0
        %764 = vdwg.mxu0
        %767 = vrot.lane.b32.xlu0 %v759, 120
        %v768 = vpop.permute.xlu0 %767
        %769 = vrot.lane.b32.xlu0 %v762, 120
        %v770 = vpop.permute.xlu0 %769
        %773 = vrot.lane.b32.xlu0 %v759, 112
        %v774 = vpop.permute.xlu0 %773
        %775 = vrot.lane.b32.xlu0 %v762, 112
        %v776 = vpop.permute.xlu0 %775
        %779 = vrot.lane.b32.xlu0 %v759, 104
        %v780 = vpop.permute.xlu0 %779
        %781 = vrot.lane.b32.xlu0 %v762, 104
        %v782 = vpop.permute.xlu0 %781
        %v785 = vpack.c.bf16 %v759, %v759
        %v786 = vpack.c.bf16 %v762, %v762
        %v787 = vpack.c.bf16 %v768, %v768
        %v788 = vpack.c.bf16 %v770, %v770
        %v789 = vpack.c.bf16 %v774, %v774
        %v790 = vpack.c.bf16 %v776, %v776
        %v791 = vpack.c.bf16 %v780, %v780
        %v792 = vpack.c.bf16 %v782, %v782
        %794 = vrot.lane.b32.xlu0 %v785, 96
        %v795 = vpop.permute.xlu0 %794
        %vm796 = vcmask 64512
        %v798 = vsel %vm796, %v785, 0
        %v801 = vsel %vm796, %v795, 0
        %803 = vmatprep.subr.bf16.mxu0 0
        %804 = vmatpush1.bf16.xpose.msra.mxu0 %v801
        %805 = vmatprep.subr.bf16.mxu0 0
        %806 = vmatpush1.bf16.xpose.msra.mxu0 0
        %807 = vmatprep.subr.bf16.mxu0 0
        %808 = vmatpush1.bf16.xpose.msra.mxu0 0
        %809 = vmatprep.subr.bf16.mxu0 0
        %810 = vmatpush1.bf16.xpose.msra.mxu0 0
        %811 = vmatprep.subr.bf16.mxu0 0
        %812 = vmatpush1.bf16.xpose.msra.mxu0 0
        %813 = vmatprep.subr.bf16.mxu0 0
        %814 = vmatpush1.bf16.xpose.msra.mxu0 0
        %815 = vmatprep.subr.bf16.mxu0 0
        %816 = vmatpush1.bf16.xpose.msra.mxu0 0
        %817 = vmatprep.subr.bf16.mxu0 0
        %818 = vmatpush1.bf16.xpose.msra.mxu0 0
        %819 = vmatprep.subr.bf16.mxu0 0
        %820 = vmatpush1.bf16.xpose.msra.mxu0 0
        %821 = vmatprep.subr.bf16.mxu0 0
        %822 = vmatpush1.bf16.xpose.msra.mxu0 0
        %823 = vmatprep.subr.bf16.mxu0 0
        %824 = vmatpush1.bf16.xpose.msra.mxu0 0
        %825 = vmatprep.subr.bf16.mxu0 0
        %826 = vmatpush1.bf16.xpose.msra.mxu0 0
        %827 = vmatprep.subr.bf16.mxu0 0
        %828 = vmatpush1.bf16.xpose.msra.mxu0 0
        %829 = vmatprep.subr.bf16.mxu0 0
        %830 = vmatpush1.bf16.xpose.msra.mxu0 0
        %831 = vmatprep.subr.bf16.mxu0 0
        %832 = vmatpush1.bf16.xpose.msra.mxu0 0
        %833 = vmatprep.subr.bf16.mxu0 0
        %834 = vmatpush1.bf16.xpose.msra.mxu0 0
        %835 = vmatprep.mubr.bf16.mxu0 0
        %836 = vmatmul.mubr.bf16.gmra.mrb[0].mxu0 %v798
        %v837 = vpop.f32.mrb[0].mxu0
        %v838 = vadd.f32 0.0, %v837
        %v839 = vpop.f32.mrb[0].mxu0
        %v840 = vpop.f32.mrb[0].mxu0
        %v841 = vpop.f32.mrb[0].mxu0
        %842 = vdwg.mxu0
        %844 = vrot.lane.b32.xlu0 %v786, 96
        %v845 = vpop.permute.xlu0 %844
        %v847 = vsel %vm796, %v786, 0
        %v850 = vsel %vm796, %v845, 0
        %852 = vmatprep.subr.bf16.mxu0 0
        %853 = vmatpush1.bf16.xpose.msra.mxu0 %v850
        %854 = vmatprep.subr.bf16.mxu0 0
        %855 = vmatpush1.bf16.xpose.msra.mxu0 0
        %856 = vmatprep.subr.bf16.mxu0 0
        %857 = vmatpush1.bf16.xpose.msra.mxu0 0
        %858 = vmatprep.subr.bf16.mxu0 0
        %859 = vmatpush1.bf16.xpose.msra.mxu0 0
        %860 = vmatprep.subr.bf16.mxu0 0
        %861 = vmatpush1.bf16.xpose.msra.mxu0 0
        %862 = vmatprep.subr.bf16.mxu0 0
        %863 = vmatpush1.bf16.xpose.msra.mxu0 0
        %864 = vmatprep.subr.bf16.mxu0 0
        %865 = vmatpush1.bf16.xpose.msra.mxu0 0
        %866 = vmatprep.subr.bf16.mxu0 0
        %867 = vmatpush1.bf16.xpose.msra.mxu0 0
        %868 = vmatprep.subr.bf16.mxu0 0
        %869 = vmatpush1.bf16.xpose.msra.mxu0 0
        %870 = vmatprep.subr.bf16.mxu0 0
        %871 = vmatpush1.bf16.xpose.msra.mxu0 0
        %872 = vmatprep.subr.bf16.mxu0 0
        %873 = vmatpush1.bf16.xpose.msra.mxu0 0
        %874 = vmatprep.subr.bf16.mxu0 0
        %875 = vmatpush1.bf16.xpose.msra.mxu0 0
        %876 = vmatprep.subr.bf16.mxu0 0
        %877 = vmatpush1.bf16.xpose.msra.mxu0 0
        %878 = vmatprep.subr.bf16.mxu0 0
        %879 = vmatpush1.bf16.xpose.msra.mxu0 0
        %880 = vmatprep.subr.bf16.mxu0 0
        %881 = vmatpush1.bf16.xpose.msra.mxu0 0
        %882 = vmatprep.subr.bf16.mxu0 0
        %883 = vmatpush1.bf16.xpose.msra.mxu0 0
        %884 = vmatprep.mubr.bf16.mxu0 0
        %885 = vmatmul.mubr.bf16.gmra.mrb[0].mxu0 %v847
        %v886 = vpop.f32.mrb[0].mxu0
        %v887 = vadd.f32 0.0, %v886
        %v888 = vpop.f32.mrb[0].mxu0
        %v889 = vpop.f32.mrb[0].mxu0
        %v890 = vpop.f32.mrb[0].mxu0
        %891 = vdwg.mxu0
        %893 = vrot.lane.b32.xlu0 %v787, 96
        %v894 = vpop.permute.xlu0 %893
        %v896 = vsel %vm796, %v787, 0
        %v899 = vsel %vm796, %v894, 0
        %901 = vmatprep.subr.bf16.mxu0 0
        %902 = vmatpush1.bf16.xpose.msra.mxu0 %v899
        %903 = vmatprep.subr.bf16.mxu0 0
        %904 = vmatpush1.bf16.xpose.msra.mxu0 0
        %905 = vmatprep.subr.bf16.mxu0 0
        %906 = vmatpush1.bf16.xpose.msra.mxu0 0
        %907 = vmatprep.subr.bf16.mxu0 0
        %908 = vmatpush1.bf16.xpose.msra.mxu0 0
        %909 = vmatprep.subr.bf16.mxu0 0
        %910 = vmatpush1.bf16.xpose.msra.mxu0 0
        %911 = vmatprep.subr.bf16.mxu0 0
        %912 = vmatpush1.bf16.xpose.msra.mxu0 0
        %913 = vmatprep.subr.bf16.mxu0 0
        %914 = vmatpush1.bf16.xpose.msra.mxu0 0
        %915 = vmatprep.subr.bf16.mxu0 0
        %916 = vmatpush1.bf16.xpose.msra.mxu0 0
        %917 = vmatprep.subr.bf16.mxu0 0
        %918 = vmatpush1.bf16.xpose.msra.mxu0 0
        %919 = vmatprep.subr.bf16.mxu0 0
        %920 = vmatpush1.bf16.xpose.msra.mxu0 0
        %921 = vmatprep.subr.bf16.mxu0 0
        %922 = vmatpush1.bf16.xpose.msra.mxu0 0
        %923 = vmatprep.subr.bf16.mxu0 0
        %924 = vmatpush1.bf16.xpose.msra.mxu0 0
        %925 = vmatprep.subr.bf16.mxu0 0
        %926 = vmatpush1.bf16.xpose.msra.mxu0 0
        %927 = vmatprep.subr.bf16.mxu0 0
        %928 = vmatpush1.bf16.xpose.msra.mxu0 0
        %929 = vmatprep.subr.bf16.mxu0 0
        %930 = vmatpush1.bf16.xpose.msra.mxu0 0
        %931 = vmatprep.subr.bf16.mxu0 0
        %932 = vmatpush1.bf16.xpose.msra.mxu0 0
        %933 = vmatprep.mubr.bf16.mxu0 0
        %934 = vmatmul.mubr.bf16.gmra.mrb[0].mxu0 %v896
        %v935 = vpop.f32.mrb[0].mxu0
        %v936 = vadd.f32 0.0, %v935
        %v937 = vpop.f32.mrb[0].mxu0
        %v938 = vpop.f32.mrb[0].mxu0
        %v939 = vpop.f32.mrb[0].mxu0
        %940 = vdwg.mxu0
        %942 = vrot.lane.b32.xlu0 %v788, 96
        %v943 = vpop.permute.xlu0 %942
        %v945 = vsel %vm796, %v788, 0
        %v948 = vsel %vm796, %v943, 0
        %950 = vmatprep.subr.bf16.mxu0 0
        %951 = vmatpush1.bf16.xpose.msra.mxu0 %v948
        %952 = vmatprep.subr.bf16.mxu0 0
        %953 = vmatpush1.bf16.xpose.msra.mxu0 0
        %954 = vmatprep.subr.bf16.mxu0 0
        %955 = vmatpush1.bf16.xpose.msra.mxu0 0
        %956 = vmatprep.subr.bf16.mxu0 0
        %957 = vmatpush1.bf16.xpose.msra.mxu0 0
        %958 = vmatprep.subr.bf16.mxu0 0
        %959 = vmatpush1.bf16.xpose.msra.mxu0 0
        %960 = vmatprep.subr.bf16.mxu0 0
        %961 = vmatpush1.bf16.xpose.msra.mxu0 0
        %962 = vmatprep.subr.bf16.mxu0 0
        %963 = vmatpush1.bf16.xpose.msra.mxu0 0
        %964 = vmatprep.subr.bf16.mxu0 0
        %965 = vmatpush1.bf16.xpose.msra.mxu0 0
        %966 = vmatprep.subr.bf16.mxu0 0
        %967 = vmatpush1.bf16.xpose.msra.mxu0 0
        %968 = vmatprep.subr.bf16.mxu0 0
        %969 = vmatpush1.bf16.xpose.msra.mxu0 0
        %970 = vmatprep.subr.bf16.mxu0 0
        %971 = vmatpush1.bf16.xpose.msra.mxu0 0
        %972 = vmatprep.subr.bf16.mxu0 0
        %973 = vmatpush1.bf16.xpose.msra.mxu0 0
        %974 = vmatprep.subr.bf16.mxu0 0
        %975 = vmatpush1.bf16.xpose.msra.mxu0 0
        %976 = vmatprep.subr.bf16.mxu0 0
        %977 = vmatpush1.bf16.xpose.msra.mxu0 0
        %978 = vmatprep.subr.bf16.mxu0 0
        %979 = vmatpush1.bf16.xpose.msra.mxu0 0
        %980 = vmatprep.subr.bf16.mxu0 0
        %981 = vmatpush1.bf16.xpose.msra.mxu0 0
        %982 = vmatprep.mubr.bf16.mxu0 0
        %983 = vmatmul.mubr.bf16.gmra.mrb[0].mxu0 %v945
        %v984 = vpop.f32.mrb[0].mxu0
        %v985 = vadd.f32 0.0, %v984
        %v986 = vpop.f32.mrb[0].mxu0
        %v987 = vpop.f32.mrb[0].mxu0
        %v988 = vpop.f32.mrb[0].mxu0
        %989 = vdwg.mxu0
        %991 = vrot.lane.b32.xlu0 %v789, 96
        %v992 = vpop.permute.xlu0 %991
        %v994 = vsel %vm796, %v789, 0
        %v997 = vsel %vm796, %v992, 0
        %999 = vmatprep.subr.bf16.mxu0 0
        %1000 = vmatpush1.bf16.xpose.msra.mxu0 %v997
        %1001 = vmatprep.subr.bf16.mxu0 0
        %1002 = vmatpush1.bf16.xpose.msra.mxu0 0
        %1003 = vmatprep.subr.bf16.mxu0 0
        %1004 = vmatpush1.bf16.xpose.msra.mxu0 0
        %1005 = vmatprep.subr.bf16.mxu0 0
        %1006 = vmatpush1.bf16.xpose.msra.mxu0 0
        %1007 = vmatprep.subr.bf16.mxu0 0
        %1008 = vmatpush1.bf16.xpose.msra.mxu0 0
        %1009 = vmatprep.subr.bf16.mxu0 0
        %1010 = vmatpush1.bf16.xpose.msra.mxu0 0
        %1011 = vmatprep.subr.bf16.mxu0 0
        %1012 = vmatpush1.bf16.xpose.msra.mxu0 0
        %1013 = vmatprep.subr.bf16.mxu0 0
        %1014 = vmatpush1.bf16.xpose.msra.mxu0 0
        %1015 = vmatprep.subr.bf16.mxu0 0
        %1016 = vmatpush1.bf16.xpose.msra.mxu0 0
        %1017 = vmatprep.subr.bf16.mxu0 0
        %1018 = vmatpush1.bf16.xpose.msra.mxu0 0
        %1019 = vmatprep.subr.bf16.mxu0 0
        %1020 = vmatpush1.bf16.xpose.msra.mxu0 0
        %1021 = vmatprep.subr.bf16.mxu0 0
        %1022 = vmatpush1.bf16.xpose.msra.mxu0 0
        %1023 = vmatprep.subr.bf16.mxu0 0
        %1024 = vmatpush1.bf16.xpose.msra.mxu0 0
        %1025 = vmatprep.subr.bf16.mxu0 0
        %1026 = vmatpush1.bf16.xpose.msra.mxu0 0
        %1027 = vmatprep.subr.bf16.mxu0 0
        %1028 = vmatpush1.bf16.xpose.msra.mxu0 0
        %1029 = vmatprep.subr.bf16.mxu0 0
        %1030 = vmatpush1.bf16.xpose.msra.mxu0 0
        %1031 = vmatprep.mubr.bf16.mxu0 0
        %1032 = vmatmul.mubr.bf16.gmra.mrb[0].mxu0 %v994
        %v1033 = vpop.f32.mrb[0].mxu0
        %v1034 = vadd.f32 0.0, %v1033
        %v1035 = vpop.f32.mrb[0].mxu0
        %v1036 = vpop.f32.mrb[0].mxu0
        %v1037 = vpop.f32.mrb[0].mxu0
        %1038 = vdwg.mxu0
        %1040 = vrot.lane.b32.xlu0 %v790, 96
        %v1041 = vpop.permute.xlu0 %1040
        %v1043 = vsel %vm796, %v790, 0
        %v1046 = vsel %vm796, %v1041, 0
        %1048 = vmatprep.subr.bf16.mxu0 0
        %1049 = vmatpush1.bf16.xpose.msra.mxu0 %v1046
        %1050 = vmatprep.subr.bf16.mxu0 0
        %1051 = vmatpush1.bf16.xpose.msra.mxu0 0
        %1052 = vmatprep.subr.bf16.mxu0 0
        %1053 = vmatpush1.bf16.xpose.msra.mxu0 0
        %1054 = vmatprep.subr.bf16.mxu0 0
        %1055 = vmatpush1.bf16.xpose.msra.mxu0 0
        %1056 = vmatprep.subr.bf16.mxu0 0
        %1057 = vmatpush1.bf16.xpose.msra.mxu0 0
        %1058 = vmatprep.subr.bf16.mxu0 0
        %1059 = vmatpush1.bf16.xpose.msra.mxu0 0
        %1060 = vmatprep.subr.bf16.mxu0 0
        %1061 = vmatpush1.bf16.xpose.msra.mxu0 0
        %1062 = vmatprep.subr.bf16.mxu0 0
        %1063 = vmatpush1.bf16.xpose.msra.mxu0 0
        %1064 = vmatprep.subr.bf16.mxu0 0
        %1065 = vmatpush1.bf16.xpose.msra.mxu0 0
        %1066 = vmatprep.subr.bf16.mxu0 0
        %1067 = vmatpush1.bf16.xpose.msra.mxu0 0
        %1068 = vmatprep.subr.bf16.mxu0 0
        %1069 = vmatpush1.bf16.xpose.msra.mxu0 0
        %1070 = vmatprep.subr.bf16.mxu0 0
        %1071 = vmatpush1.bf16.xpose.msra.mxu0 0
        %1072 = vmatprep.subr.bf16.mxu0 0
        %1073 = vmatpush1.bf16.xpose.msra.mxu0 0
        %1074 = vmatprep.subr.bf16.mxu0 0
        %1075 = vmatpush1.bf16.xpose.msra.mxu0 0
        %1076 = vmatprep.subr.bf16.mxu0 0
        %1077 = vmatpush1.bf16.xpose.msra.mxu0 0
        %1078 = vmatprep.subr.bf16.mxu0 0
        %1079 = vmatpush1.bf16.xpose.msra.mxu0 0
        %1080 = vmatprep.mubr.bf16.mxu0 0
        %1081 = vmatmul.mubr.bf16.gmra.mrb[0].mxu0 %v1043
        %v1082 = vpop.f32.mrb[0].mxu0
        %v1083 = vadd.f32 0.0, %v1082
        %v1084 = vpop.f32.mrb[0].mxu0
        %v1085 = vpop.f32.mrb[0].mxu0
        %v1086 = vpop.f32.mrb[0].mxu0
        %1087 = vdwg.mxu0
        %1089 = vrot.lane.b32.xlu0 %v791, 96
        %v1090 = vpop.permute.xlu0 %1089
        %v1092 = vsel %vm796, %v791, 0
        %v1095 = vsel %vm796, %v1090, 0
        %1097 = vmatprep.subr.bf16.mxu0 0
        %1098 = vmatpush1.bf16.xpose.msra.mxu0 %v1095
        %1099 = vmatprep.subr.bf16.mxu0 0
        %1100 = vmatpush1.bf16.xpose.msra.mxu0 0
        %1101 = vmatprep.subr.bf16.mxu0 0
        %1102 = vmatpush1.bf16.xpose.msra.mxu0 0
        %1103 = vmatprep.subr.bf16.mxu0 0
        %1104 = vmatpush1.bf16.xpose.msra.mxu0 0
        %1105 = vmatprep.subr.bf16.mxu0 0
        %1106 = vmatpush1.bf16.xpose.msra.mxu0 0
        %1107 = vmatprep.subr.bf16.mxu0 0
        %1108 = vmatpush1.bf16.xpose.msra.mxu0 0
        %1109 = vmatprep.subr.bf16.mxu0 0
        %1110 = vmatpush1.bf16.xpose.msra.mxu0 0
        %1111 = vmatprep.subr.bf16.mxu0 0
        %1112 = vmatpush1.bf16.xpose.msra.mxu0 0
        %1113 = vmatprep.subr.bf16.mxu0 0
        %1114 = vmatpush1.bf16.xpose.msra.mxu0 0
        %1115 = vmatprep.subr.bf16.mxu0 0
        %1116 = vmatpush1.bf16.xpose.msra.mxu0 0
        %1117 = vmatprep.subr.bf16.mxu0 0
        %1118 = vmatpush1.bf16.xpose.msra.mxu0 0
        %1119 = vmatprep.subr.bf16.mxu0 0
        %1120 = vmatpush1.bf16.xpose.msra.mxu0 0
        %1121 = vmatprep.subr.bf16.mxu0 0
        %1122 = vmatpush1.bf16.xpose.msra.mxu0 0
        %1123 = vmatprep.subr.bf16.mxu0 0
        %1124 = vmatpush1.bf16.xpose.msra.mxu0 0
        %1125 = vmatprep.subr.bf16.mxu0 0
        %1126 = vmatpush1.bf16.xpose.msra.mxu0 0
        %1127 = vmatprep.subr.bf16.mxu0 0
        %1128 = vmatpush1.bf16.xpose.msra.mxu0 0
        %1129 = vmatprep.mubr.bf16.mxu0 0
        %1130 = vmatmul.mubr.bf16.gmra.mrb[0].mxu0 %v1092
        %v1131 = vpop.f32.mrb[0].mxu0
        %v1132 = vadd.f32 0.0, %v1131
        %v1133 = vpop.f32.mrb[0].mxu0
        %v1134 = vpop.f32.mrb[0].mxu0
        %v1135 = vpop.f32.mrb[0].mxu0
        %1136 = vdwg.mxu0
        %1138 = vrot.lane.b32.xlu0 %v792, 96
        %v1139 = vpop.permute.xlu0 %1138
        %v1141 = vsel %vm796, %v792, 0
        %v1144 = vsel %vm796, %v1139, 0
        %1146 = vmatprep.subr.bf16.mxu0 0
        %1147 = vmatpush1.bf16.xpose.msra.mxu0 %v1144
        %1148 = vmatprep.subr.bf16.mxu0 0
        %1149 = vmatpush1.bf16.xpose.msra.mxu0 0
        %1150 = vmatprep.subr.bf16.mxu0 0
        %1151 = vmatpush1.bf16.xpose.msra.mxu0 0
        %1152 = vmatprep.subr.bf16.mxu0 0
        %1153 = vmatpush1.bf16.xpose.msra.mxu0 0
        %1154 = vmatprep.subr.bf16.mxu0 0
        %1155 = vmatpush1.bf16.xpose.msra.mxu0 0
        %1156 = vmatprep.subr.bf16.mxu0 0
        %1157 = vmatpush1.bf16.xpose.msra.mxu0 0
        %1158 = vmatprep.subr.bf16.mxu0 0
        %1159 = vmatpush1.bf16.xpose.msra.mxu0 0
        %1160 = vmatprep.subr.bf16.mxu0 0
        %1161 = vmatpush1.bf16.xpose.msra.mxu0 0
        %1162 = vmatprep.subr.bf16.mxu0 0
        %1163 = vmatpush1.bf16.xpose.msra.mxu0 0
        %1164 = vmatprep.subr.bf16.mxu0 0
        %1165 = vmatpush1.bf16.xpose.msra.mxu0 0
        %1166 = vmatprep.subr.bf16.mxu0 0
        %1167 = vmatpush1.bf16.xpose.msra.mxu0 0
        %1168 = vmatprep.subr.bf16.mxu0 0
        %1169 = vmatpush1.bf16.xpose.msra.mxu0 0
        %1170 = vmatprep.subr.bf16.mxu0 0
        %1171 = vmatpush1.bf16.xpose.msra.mxu0 0
        %1172 = vmatprep.subr.bf16.mxu0 0
        %1173 = vmatpush1.bf16.xpose.msra.mxu0 0
        %1174 = vmatprep.subr.bf16.mxu0 0
        %1175 = vmatpush1.bf16.xpose.msra.mxu0 0
        %1176 = vmatprep.subr.bf16.mxu0 0
        %1177 = vmatpush1.bf16.xpose.msra.mxu0 0
        %1178 = vmatprep.mubr.bf16.mxu0 0
        %1179 = vmatmul.mubr.bf16.gmra.mrb[0].mxu0 %v1141
        %v1180 = vpop.f32.mrb[0].mxu0
        %v1181 = vadd.f32 0.0, %v1180
        %v1182 = vpop.f32.mrb[0].mxu0
        %v1183 = vpop.f32.mrb[0].mxu0
        %v1184 = vpop.f32.mrb[0].mxu0
        %1185 = vdwg.mxu0
        %v1186 = vsel %vm796, %v838, -inf
        %1187 = vmax.xlane.f32.xlu0 %v1186
        %v1188 = vpop.xlane.xlu0 %1187
        %v1189 = vsel %vm796, %v887, -inf
        %1190 = vmax.xlane.f32.xlu0 %v1189
        %v1191 = vpop.xlane.xlu0 %1190
        %v1192 = vsel %vm796, %v936, -inf
        %1193 = vmax.xlane.f32.xlu0 %v1192
        %v1194 = vpop.xlane.xlu0 %1193
        %v1195 = vsel %vm796, %v985, -inf
        %1196 = vmax.xlane.f32.xlu0 %v1195
        %v1197 = vpop.xlane.xlu0 %1196
        %v1198 = vsel %vm796, %v1034, -inf
        %1199 = vmax.xlane.f32.xlu0 %v1198
        %v1200 = vpop.xlane.xlu0 %1199
        %v1201 = vsel %vm796, %v1083, -inf
        %1202 = vmax.xlane.f32.xlu0 %v1201
        %v1203 = vpop.xlane.xlu0 %1202
        %v1204 = vsel %vm796, %v1132, -inf
        %1205 = vmax.xlane.f32.xlu0 %v1204
        %v1206 = vpop.xlane.xlu0 %1205
        %v1207 = vsel %vm796, %v1181, -inf
        %1208 = vmax.xlane.f32.xlu0 %v1207
        %v1209 = vpop.xlane.xlu0 %1208
        %v1210 = vsub.f32 %v838, %v1188
        %v1211 = vsub.f32 %v887, %v1191
        %v1212 = vsub.f32 %v936, %v1194
        %v1213 = vsub.f32 %v985, %v1197
        %v1214 = vsub.f32 %v1034, %v1200
        %v1215 = vsub.f32 %v1083, %v1203
        %v1216 = vsub.f32 %v1132, %v1206
        %v1217 = vsub.f32 %v1181, %v1209
        %v1218 = vmul.f32 %v1210, 1.442695
        %v1219 = vpow.pop %v1218
        %v1220 = vmul.f32 %v1211, 1.442695
        %v1221 = vpow.pop %v1220
        %v1222 = vmul.f32 %v1212, 1.442695
        %v1223 = vpow.pop %v1222
        %v1224 = vmul.f32 %v1213, 1.442695
        %v1225 = vpow.pop %v1224
        %v1226 = vmul.f32 %v1214, 1.442695
        %v1227 = vpow.pop %v1226
        %v1228 = vmul.f32 %v1215, 1.442695
        %v1229 = vpow.pop %v1228
        %v1230 = vmul.f32 %v1216, 1.442695
        %v1231 = vpow.pop %v1230
        %v1232 = vmul.f32 %v1217, 1.442695
        %v1233 = vpow.pop %v1232
        %v1234 = vsel %vm796, %v1219, 0.0
        %1235 = vadd.xlane.f32.xlu0 %v1234
        %v1236 = vpop.xlane.xlu0 %1235
        %v1237 = vsel %vm796, %v1221, 0.0
        %1238 = vadd.xlane.f32.xlu0 %v1237
        %v1239 = vpop.xlane.xlu0 %1238
        %v1240 = vsel %vm796, %v1223, 0.0
        %1241 = vadd.xlane.f32.xlu0 %v1240
        %v1242 = vpop.xlane.xlu0 %1241
        %v1243 = vsel %vm796, %v1225, 0.0
        %1244 = vadd.xlane.f32.xlu0 %v1243
        %v1245 = vpop.xlane.xlu0 %1244
        %v1246 = vsel %vm796, %v1227, 0.0
        %1247 = vadd.xlane.f32.xlu0 %v1246
        %v1248 = vpop.xlane.xlu0 %1247
        %v1249 = vsel %vm796, %v1229, 0.0
        %1250 = vadd.xlane.f32.xlu0 %v1249
        %v1251 = vpop.xlane.xlu0 %1250
        %v1252 = vsel %vm796, %v1231, 0.0
        %1253 = vadd.xlane.f32.xlu0 %v1252
        %v1254 = vpop.xlane.xlu0 %1253
        %v1255 = vsel %vm796, %v1233, 0.0
        %1256 = vadd.xlane.f32.xlu0 %v1255
        %v1257 = vpop.xlane.xlu0 %1256
        %v1258 = vpack.c.bf16 %v1219, %v1219
        %v1259 = vpack.c.bf16 %v1221, %v1221
        %v1260 = vpack.c.bf16 %v1223, %v1223
        %v1261 = vpack.c.bf16 %v1225, %v1225
        %v1262 = vpack.c.bf16 %v1227, %v1227
        %v1263 = vpack.c.bf16 %v1229, %v1229
        %v1264 = vpack.c.bf16 %v1231, %v1231
        %v1265 = vpack.c.bf16 %v1233, %v1233
        %1266 = vrot.lane.b32.xlu0 %v785, 64
        %v1267 = vpop.permute.xlu0 %1266
        %v1269 = vsel %vm796, %v1258, 0
        %vm1271 = vcmask 1043456
        %v1273 = vsel %vm1271, %v1267, 0
        %1275 = vmatprep.subr.bf16.mxu0 0
        %1276 = vmatpush1.bf16.msra.mxu0 %v1273
        %1277 = vmatprep.subr.bf16.mxu0 0
        %1278 = vmatpush1.bf16.msra.mxu0 0
        %1279 = vmatprep.subr.bf16.mxu0 0
        %1280 = vmatpush1.bf16.msra.mxu0 0
        %1281 = vmatprep.subr.bf16.mxu0 0
        %1282 = vmatpush1.bf16.msra.mxu0 0
        %1283 = vmatprep.subr.bf16.mxu0 0
        %1284 = vmatpush1.bf16.msra.mxu0 0
        %1285 = vmatprep.subr.bf16.mxu0 0
        %1286 = vmatpush1.bf16.msra.mxu0 0
        %1287 = vmatprep.subr.bf16.mxu0 0
        %1288 = vmatpush1.bf16.msra.mxu0 0
        %1289 = vmatprep.subr.bf16.mxu0 0
        %1290 = vmatpush1.bf16.msra.mxu0 0
        %1291 = vmatprep.subr.bf16.mxu0 0
        %1292 = vmatpush1.bf16.msra.mxu0 0
        %1293 = vmatprep.subr.bf16.mxu0 0
        %1294 = vmatpush1.bf16.msra.mxu0 0
        %1295 = vmatprep.subr.bf16.mxu0 0
        %1296 = vmatpush1.bf16.msra.mxu0 0
        %1297 = vmatprep.subr.bf16.mxu0 0
        %1298 = vmatpush1.bf16.msra.mxu0 0
        %1299 = vmatprep.subr.bf16.mxu0 0
        %1300 = vmatpush1.bf16.msra.mxu0 0
        %1301 = vmatprep.subr.bf16.mxu0 0
        %1302 = vmatpush1.bf16.msra.mxu0 0
        %1303 = vmatprep.subr.bf16.mxu0 0
        %1304 = vmatpush1.bf16.msra.mxu0 0
        %1305 = vmatprep.subr.bf16.mxu0 0
        %1306 = vmatpush1.bf16.msra.mxu0 0
        %1307 = vmatprep.mubr.bf16.mxu0 0
        %1308 = vmatmul.mubr.bf16.gmra.mrb[0].mxu0 %v1269
        %v1309 = vpop.f32.mrb[0].mxu0
        %v1310 = vadd.f32 0.0, %v1309
        %v1311 = vpop.f32.mrb[0].mxu0
        %v1312 = vpop.f32.mrb[0].mxu0
        %v1313 = vpop.f32.mrb[0].mxu0
        %1314 = vdwg.mxu0
        %1315 = vrot.lane.b32.xlu0 %v786, 64
        %v1316 = vpop.permute.xlu0 %1315
        %v1318 = vsel %vm796, %v1259, 0
        %v1321 = vsel %vm1271, %v1316, 0
        %1323 = vmatprep.subr.bf16.mxu0 0
        %1324 = vmatpush1.bf16.msra.mxu0 %v1321
        %1325 = vmatprep.subr.bf16.mxu0 0
        %1326 = vmatpush1.bf16.msra.mxu0 0
        %1327 = vmatprep.subr.bf16.mxu0 0
        %1328 = vmatpush1.bf16.msra.mxu0 0
        %1329 = vmatprep.subr.bf16.mxu0 0
        %1330 = vmatpush1.bf16.msra.mxu0 0
        %1331 = vmatprep.subr.bf16.mxu0 0
        %1332 = vmatpush1.bf16.msra.mxu0 0
        %1333 = vmatprep.subr.bf16.mxu0 0
        %1334 = vmatpush1.bf16.msra.mxu0 0
        %1335 = vmatprep.subr.bf16.mxu0 0
        %1336 = vmatpush1.bf16.msra.mxu0 0
        %1337 = vmatprep.subr.bf16.mxu0 0
        %1338 = vmatpush1.bf16.msra.mxu0 0
        %1339 = vmatprep.subr.bf16.mxu0 0
        %1340 = vmatpush1.bf16.msra.mxu0 0
        %1341 = vmatprep.subr.bf16.mxu0 0
        %1342 = vmatpush1.bf16.msra.mxu0 0
        %1343 = vmatprep.subr.bf16.mxu0 0
        %1344 = vmatpush1.bf16.msra.mxu0 0
        %1345 = vmatprep.subr.bf16.mxu0 0
        %1346 = vmatpush1.bf16.msra.mxu0 0
        %1347 = vmatprep.subr.bf16.mxu0 0
        %1348 = vmatpush1.bf16.msra.mxu0 0
        %1349 = vmatprep.subr.bf16.mxu0 0
        %1350 = vmatpush1.bf16.msra.mxu0 0
        %1351 = vmatprep.subr.bf16.mxu0 0
        %1352 = vmatpush1.bf16.msra.mxu0 0
        %1353 = vmatprep.subr.bf16.mxu0 0
        %1354 = vmatpush1.bf16.msra.mxu0 0
        %1355 = vmatprep.mubr.bf16.mxu0 0
        %1356 = vmatmul.mubr.bf16.gmra.mrb[0].mxu0 %v1318
        %v1357 = vpop.f32.mrb[0].mxu0
        %v1358 = vadd.f32 0.0, %v1357
        %v1359 = vpop.f32.mrb[0].mxu0
        %v1360 = vpop.f32.mrb[0].mxu0
        %v1361 = vpop.f32.mrb[0].mxu0
        %1362 = vdwg.mxu0
        %1363 = vrot.lane.b32.xlu0 %v787, 64
        %v1364 = vpop.permute.xlu0 %1363
        %v1366 = vsel %vm796, %v1260, 0
        %v1369 = vsel %vm1271, %v1364, 0
        %1371 = vmatprep.subr.bf16.mxu0 0
        %1372 = vmatpush1.bf16.msra.mxu0 %v1369
        %1373 = vmatprep.subr.bf16.mxu0 0
        %1374 = vmatpush1.bf16.msra.mxu0 0
        %1375 = vmatprep.subr.bf16.mxu0 0
        %1376 = vmatpush1.bf16.msra.mxu0 0
        %1377 = vmatprep.subr.bf16.mxu0 0
        %1378 = vmatpush1.bf16.msra.mxu0 0
        %1379 = vmatprep.subr.bf16.mxu0 0
        %1380 = vmatpush1.bf16.msra.mxu0 0
        %1381 = vmatprep.subr.bf16.mxu0 0
        %1382 = vmatpush1.bf16.msra.mxu0 0
        %1383 = vmatprep.subr.bf16.mxu0 0
        %1384 = vmatpush1.bf16.msra.mxu0 0
        %1385 = vmatprep.subr.bf16.mxu0 0
        %1386 = vmatpush1.bf16.msra.mxu0 0
        %1387 = vmatprep.subr.bf16.mxu0 0
        %1388 = vmatpush1.bf16.msra.mxu0 0
        %1389 = vmatprep.subr.bf16.mxu0 0
        %1390 = vmatpush1.bf16.msra.mxu0 0
        %1391 = vmatprep.subr.bf16.mxu0 0
        %1392 = vmatpush1.bf16.msra.mxu0 0
        %1393 = vmatprep.subr.bf16.mxu0 0
        %1394 = vmatpush1.bf16.msra.mxu0 0
        %1395 = vmatprep.subr.bf16.mxu0 0
        %1396 = vmatpush1.bf16.msra.mxu0 0
        %1397 = vmatprep.subr.bf16.mxu0 0
        %1398 = vmatpush1.bf16.msra.mxu0 0
        %1399 = vmatprep.subr.bf16.mxu0 0
        %1400 = vmatpush1.bf16.msra.mxu0 0
        %1401 = vmatprep.subr.bf16.mxu0 0
        %1402 = vmatpush1.bf16.msra.mxu0 0
        %1403 = vmatprep.mubr.bf16.mxu0 0
        %1404 = vmatmul.mubr.bf16.gmra.mrb[0].mxu0 %v1366
        %v1405 = vpop.f32.mrb[0].mxu0
        %v1406 = vadd.f32 0.0, %v1405
        %v1407 = vpop.f32.mrb[0].mxu0
        %v1408 = vpop.f32.mrb[0].mxu0
        %v1409 = vpop.f32.mrb[0].mxu0
        %1410 = vdwg.mxu0
        %1411 = vrot.lane.b32.xlu0 %v788, 64
        %v1412 = vpop.permute.xlu0 %1411
        %v1414 = vsel %vm796, %v1261, 0
        %v1417 = vsel %vm1271, %v1412, 0
        %1419 = vmatprep.subr.bf16.mxu0 0
        %1420 = vmatpush1.bf16.msra.mxu0 %v1417
        %1421 = vmatprep.subr.bf16.mxu0 0
        %1422 = vmatpush1.bf16.msra.mxu0 0
        %1423 = vmatprep.subr.bf16.mxu0 0
        %1424 = vmatpush1.bf16.msra.mxu0 0
        %1425 = vmatprep.subr.bf16.mxu0 0
        %1426 = vmatpush1.bf16.msra.mxu0 0
        %1427 = vmatprep.subr.bf16.mxu0 0
        %1428 = vmatpush1.bf16.msra.mxu0 0
        %1429 = vmatprep.subr.bf16.mxu0 0
        %1430 = vmatpush1.bf16.msra.mxu0 0
        %1431 = vmatprep.subr.bf16.mxu0 0
        %1432 = vmatpush1.bf16.msra.mxu0 0
        %1433 = vmatprep.subr.bf16.mxu0 0
        %1434 = vmatpush1.bf16.msra.mxu0 0
        %1435 = vmatprep.subr.bf16.mxu0 0
        %1436 = vmatpush1.bf16.msra.mxu0 0
        %1437 = vmatprep.subr.bf16.mxu0 0
        %1438 = vmatpush1.bf16.msra.mxu0 0
        %1439 = vmatprep.subr.bf16.mxu0 0
        %1440 = vmatpush1.bf16.msra.mxu0 0
        %1441 = vmatprep.subr.bf16.mxu0 0
        %1442 = vmatpush1.bf16.msra.mxu0 0
        %1443 = vmatprep.subr.bf16.mxu0 0
        %1444 = vmatpush1.bf16.msra.mxu0 0
        %1445 = vmatprep.subr.bf16.mxu0 0
        %1446 = vmatpush1.bf16.msra.mxu0 0
        %1447 = vmatprep.subr.bf16.mxu0 0
        %1448 = vmatpush1.bf16.msra.mxu0 0
        %1449 = vmatprep.subr.bf16.mxu0 0
        %1450 = vmatpush1.bf16.msra.mxu0 0
        %1451 = vmatprep.mubr.bf16.mxu0 0
        %1452 = vmatmul.mubr.bf16.gmra.mrb[0].mxu0 %v1414
        %v1453 = vpop.f32.mrb[0].mxu0
        %v1454 = vadd.f32 0.0, %v1453
        %v1455 = vpop.f32.mrb[0].mxu0
        %v1456 = vpop.f32.mrb[0].mxu0
        %v1457 = vpop.f32.mrb[0].mxu0
        %1458 = vdwg.mxu0
        %1459 = vrot.lane.b32.xlu0 %v789, 64
        %v1460 = vpop.permute.xlu0 %1459
        %v1462 = vsel %vm796, %v1262, 0
        %v1465 = vsel %vm1271, %v1460, 0
        %1467 = vmatprep.subr.bf16.mxu0 0
        %1468 = vmatpush1.bf16.msra.mxu0 %v1465
        %1469 = vmatprep.subr.bf16.mxu0 0
        %1470 = vmatpush1.bf16.msra.mxu0 0
        %1471 = vmatprep.subr.bf16.mxu0 0
        %1472 = vmatpush1.bf16.msra.mxu0 0
        %1473 = vmatprep.subr.bf16.mxu0 0
        %1474 = vmatpush1.bf16.msra.mxu0 0
        %1475 = vmatprep.subr.bf16.mxu0 0
        %1476 = vmatpush1.bf16.msra.mxu0 0
        %1477 = vmatprep.subr.bf16.mxu0 0
        %1478 = vmatpush1.bf16.msra.mxu0 0
        %1479 = vmatprep.subr.bf16.mxu0 0
        %1480 = vmatpush1.bf16.msra.mxu0 0
        %1481 = vmatprep.subr.bf16.mxu0 0
        %1482 = vmatpush1.bf16.msra.mxu0 0
        %1483 = vmatprep.subr.bf16.mxu0 0
        %1484 = vmatpush1.bf16.msra.mxu0 0
        %1485 = vmatprep.subr.bf16.mxu0 0
        %1486 = vmatpush1.bf16.msra.mxu0 0
        %1487 = vmatprep.subr.bf16.mxu0 0
        %1488 = vmatpush1.bf16.msra.mxu0 0
        %1489 = vmatprep.subr.bf16.mxu0 0
        %1490 = vmatpush1.bf16.msra.mxu0 0
        %1491 = vmatprep.subr.bf16.mxu0 0
        %1492 = vmatpush1.bf16.msra.mxu0 0
        %1493 = vmatprep.subr.bf16.mxu0 0
        %1494 = vmatpush1.bf16.msra.mxu0 0
        %1495 = vmatprep.subr.bf16.mxu0 0
        %1496 = vmatpush1.bf16.msra.mxu0 0
        %1497 = vmatprep.subr.bf16.mxu0 0
        %1498 = vmatpush1.bf16.msra.mxu0 0
        %1499 = vmatprep.mubr.bf16.mxu0 0
        %1500 = vmatmul.mubr.bf16.gmra.mrb[0].mxu0 %v1462
        %v1501 = vpop.f32.mrb[0].mxu0
        %v1502 = vadd.f32 0.0, %v1501
        %v1503 = vpop.f32.mrb[0].mxu0
        %v1504 = vpop.f32.mrb[0].mxu0
        %v1505 = vpop.f32.mrb[0].mxu0
        %1506 = vdwg.mxu0
        %1507 = vrot.lane.b32.xlu0 %v790, 64
        %v1508 = vpop.permute.xlu0 %1507
        %v1510 = vsel %vm796, %v1263, 0
        %v1513 = vsel %vm1271, %v1508, 0
        %1515 = vmatprep.subr.bf16.mxu0 0
        %1516 = vmatpush1.bf16.msra.mxu0 %v1513
        %1517 = vmatprep.subr.bf16.mxu0 0
        %1518 = vmatpush1.bf16.msra.mxu0 0
        %1519 = vmatprep.subr.bf16.mxu0 0
        %1520 = vmatpush1.bf16.msra.mxu0 0
        %1521 = vmatprep.subr.bf16.mxu0 0
        %1522 = vmatpush1.bf16.msra.mxu0 0
        %1523 = vmatprep.subr.bf16.mxu0 0
        %1524 = vmatpush1.bf16.msra.mxu0 0
        %1525 = vmatprep.subr.bf16.mxu0 0
        %1526 = vmatpush1.bf16.msra.mxu0 0
        %1527 = vmatprep.subr.bf16.mxu0 0
        %1528 = vmatpush1.bf16.msra.mxu0 0
        %1529 = vmatprep.subr.bf16.mxu0 0
        %1530 = vmatpush1.bf16.msra.mxu0 0
        %1531 = vmatprep.subr.bf16.mxu0 0
        %1532 = vmatpush1.bf16.msra.mxu0 0
        %1533 = vmatprep.subr.bf16.mxu0 0
        %1534 = vmatpush1.bf16.msra.mxu0 0
        %1535 = vmatprep.subr.bf16.mxu0 0
        %1536 = vmatpush1.bf16.msra.mxu0 0
        %1537 = vmatprep.subr.bf16.mxu0 0
        %1538 = vmatpush1.bf16.msra.mxu0 0
        %1539 = vmatprep.subr.bf16.mxu0 0
        %1540 = vmatpush1.bf16.msra.mxu0 0
        %1541 = vmatprep.subr.bf16.mxu0 0
        %1542 = vmatpush1.bf16.msra.mxu0 0
        %1543 = vmatprep.subr.bf16.mxu0 0
        %1544 = vmatpush1.bf16.msra.mxu0 0
        %1545 = vmatprep.subr.bf16.mxu0 0
        %1546 = vmatpush1.bf16.msra.mxu0 0
        %1547 = vmatprep.mubr.bf16.mxu0 0
        %1548 = vmatmul.mubr.bf16.gmra.mrb[0].mxu0 %v1510
        %v1549 = vpop.f32.mrb[0].mxu0
        %v1550 = vadd.f32 0.0, %v1549
        %v1551 = vpop.f32.mrb[0].mxu0
        %v1552 = vpop.f32.mrb[0].mxu0
        %v1553 = vpop.f32.mrb[0].mxu0
        %1554 = vdwg.mxu0
        %1555 = vrot.lane.b32.xlu0 %v791, 64
        %v1556 = vpop.permute.xlu0 %1555
        %v1558 = vsel %vm796, %v1264, 0
        %v1561 = vsel %vm1271, %v1556, 0
        %1563 = vmatprep.subr.bf16.mxu0 0
        %1564 = vmatpush1.bf16.msra.mxu0 %v1561
        %1565 = vmatprep.subr.bf16.mxu0 0
        %1566 = vmatpush1.bf16.msra.mxu0 0
        %1567 = vmatprep.subr.bf16.mxu0 0
        %1568 = vmatpush1.bf16.msra.mxu0 0
        %1569 = vmatprep.subr.bf16.mxu0 0
        %1570 = vmatpush1.bf16.msra.mxu0 0
        %1571 = vmatprep.subr.bf16.mxu0 0
        %1572 = vmatpush1.bf16.msra.mxu0 0
        %1573 = vmatprep.subr.bf16.mxu0 0
        %1574 = vmatpush1.bf16.msra.mxu0 0
        %1575 = vmatprep.subr.bf16.mxu0 0
        %1576 = vmatpush1.bf16.msra.mxu0 0
        %1577 = vmatprep.subr.bf16.mxu0 0
        %1578 = vmatpush1.bf16.msra.mxu0 0
        %1579 = vmatprep.subr.bf16.mxu0 0
        %1580 = vmatpush1.bf16.msra.mxu0 0
        %1581 = vmatprep.subr.bf16.mxu0 0
        %1582 = vmatpush1.bf16.msra.mxu0 0
        %1583 = vmatprep.subr.bf16.mxu0 0
        %1584 = vmatpush1.bf16.msra.mxu0 0
        %1585 = vmatprep.subr.bf16.mxu0 0
        %1586 = vmatpush1.bf16.msra.mxu0 0
        %1587 = vmatprep.subr.bf16.mxu0 0
        %1588 = vmatpush1.bf16.msra.mxu0 0
        %1589 = vmatprep.subr.bf16.mxu0 0
        %1590 = vmatpush1.bf16.msra.mxu0 0
        %1591 = vmatprep.subr.bf16.mxu0 0
        %1592 = vmatpush1.bf16.msra.mxu0 0
        %1593 = vmatprep.subr.bf16.mxu0 0
        %1594 = vmatpush1.bf16.msra.mxu0 0
        %1595 = vmatprep.mubr.bf16.mxu0 0
        %1596 = vmatmul.mubr.bf16.gmra.mrb[0].mxu0 %v1558
        %v1597 = vpop.f32.mrb[0].mxu0
        %v1598 = vadd.f32 0.0, %v1597
        %v1599 = vpop.f32.mrb[0].mxu0
        %v1600 = vpop.f32.mrb[0].mxu0
        %v1601 = vpop.f32.mrb[0].mxu0
        %1602 = vdwg.mxu0
        %1603 = vrot.lane.b32.xlu0 %v792, 64
        %v1604 = vpop.permute.xlu0 %1603
        %v1606 = vsel %vm796, %v1265, 0
        %v1609 = vsel %vm1271, %v1604, 0
        %1611 = vmatprep.subr.bf16.mxu0 0
        %1612 = vmatpush1.bf16.msra.mxu0 %v1609
        %1613 = vmatprep.subr.bf16.mxu0 0
        %1614 = vmatpush1.bf16.msra.mxu0 0
        %1615 = vmatprep.subr.bf16.mxu0 0
        %1616 = vmatpush1.bf16.msra.mxu0 0
        %1617 = vmatprep.subr.bf16.mxu0 0
        %1618 = vmatpush1.bf16.msra.mxu0 0
        %1619 = vmatprep.subr.bf16.mxu0 0
        %1620 = vmatpush1.bf16.msra.mxu0 0
        %1621 = vmatprep.subr.bf16.mxu0 0
        %1622 = vmatpush1.bf16.msra.mxu0 0
        %1623 = vmatprep.subr.bf16.mxu0 0
        %1624 = vmatpush1.bf16.msra.mxu0 0
        %1625 = vmatprep.subr.bf16.mxu0 0
        %1626 = vmatpush1.bf16.msra.mxu0 0
        %1627 = vmatprep.subr.bf16.mxu0 0
        %1628 = vmatpush1.bf16.msra.mxu0 0
        %1629 = vmatprep.subr.bf16.mxu0 0
        %1630 = vmatpush1.bf16.msra.mxu0 0
        %1631 = vmatprep.subr.bf16.mxu0 0
        %1632 = vmatpush1.bf16.msra.mxu0 0
        %1633 = vmatprep.subr.bf16.mxu0 0
        %1634 = vmatpush1.bf16.msra.mxu0 0
        %1635 = vmatprep.subr.bf16.mxu0 0
        %1636 = vmatpush1.bf16.msra.mxu0 0
        %1637 = vmatprep.subr.bf16.mxu0 0
        %1638 = vmatpush1.bf16.msra.mxu0 0
        %1639 = vmatprep.subr.bf16.mxu0 0
        %1640 = vmatpush1.bf16.msra.mxu0 0
        %1641 = vmatprep.subr.bf16.mxu0 0
        %1642 = vmatpush1.bf16.msra.mxu0 0
        %1643 = vmatprep.mubr.bf16.mxu0 0
        %1644 = vmatmul.mubr.bf16.gmra.mrb[0].mxu0 %v1606
        %v1645 = vpop.f32.mrb[0].mxu0
        %v1646 = vadd.f32 0.0, %v1645
        %v1647 = vpop.f32.mrb[0].mxu0
        %v1648 = vpop.f32.mrb[0].mxu0
        %v1649 = vpop.f32.mrb[0].mxu0
        %1650 = vdwg.mxu0
        %v1651 = vrcp.pop %v1236
        %v1652 = vrcp.pop %v1239
        %v1653 = vrcp.pop %v1242
        %v1654 = vrcp.pop %v1245
        %v1655 = vrcp.pop %v1248
        %v1656 = vrcp.pop %v1251
        %v1657 = vrcp.pop %v1254
        %v1658 = vrcp.pop %v1257
        %v1659 = vmul.f32 %v1310, %v1651
        %v1660 = vmul.f32 %v1358, %v1652
        %v1661 = vmul.f32 %v1406, %v1653
        %v1662 = vmul.f32 %v1454, %v1654
        %v1663 = vmul.f32 %v1502, %v1655
        %v1664 = vmul.f32 %v1550, %v1656
        %v1665 = vmul.f32 %v1598, %v1657
        %v1666 = vmul.f32 %v1646, %v1658
        %1669 = vrot.lane.b32.xlu0 %v1661, 8
        %v1670 = vpop.permute.xlu0 %1669
        %1671 = vrot.lane.b32.xlu0 %v1662, 8
        %v1672 = vpop.permute.xlu0 %1671
        %1677 = vrot.lane.b32.xlu0 %v1663, 16
        %v1678 = vpop.permute.xlu0 %1677
        %1679 = vrot.lane.b32.xlu0 %v1664, 16
        %v1680 = vpop.permute.xlu0 %1679
        %1685 = vrot.lane.b32.xlu0 %v1665, 24
        %v1686 = vpop.permute.xlu0 %1685
        %1687 = vrot.lane.b32.xlu0 %v1666, 24
        %v1688 = vpop.permute.xlu0 %1687
        %v1691 = vsel %vm796, %v1659, %v1670
        %v1692 = vsel %vm796, %v1660, %v1672
        %vm1693 = vcmask 130048
        %v1694 = vsel %vm1693, %v1691, %v1678
        %v1695 = vsel %vm1693, %v1692, %v1680
        %vm1696 = vcmask 195584
        %v1697 = vsel %vm1696, %v1694, %v1686
        %v1698 = vsel %vm1696, %v1695, %v1688
        %v1699 = vpack.c.bf16 %v1698, %v1697
        %v1700 = vld [vmem:[%s612] sm:$0xf]
        %v1701 = vld [vmem:[%s612 + $0x4] sm:$0xf]
        %v1702 = vld [vmem:[%s612 + $0x8] sm:$0xf]
        %v1703 = vld [vmem:[%s612 + $0xc] sm:$0xf]
        %v1704 = vld [vmem:[%s615] sm:$0x1]
        %v1706 = vlaneseq
        %v1707 = vshrl.u32 %v1706, 7
        %v1708 = vsub.s32 0, %v1707
        %v1709 = vrot.slane %v1704, %v1708
        %v1715 = vunpack.c.l.b16 %v1700
        %v1716 = vunpack.c.l.b16 %v1701
        %v1717 = vunpack.c.l.b16 %v1702
        %v1718 = vunpack.c.l.b16 %v1703
        %v1719 = vpack.c.b16 %v1716, %v1715
        %v1720 = vpack.c.b16 %v1718, %v1717
        %v1724 = vsel %vm653, %v1699, 0
        %1726 = vmatprep.subr.bf16.mxu0 0
        %1727 = vmatpush1.bf16.msra.mxu0 %v1719
        %1728 = vmatprep.subr.bf16.mxu0 0
        %1729 = vmatpush1.bf16.msra.mxu0 %v1720
        %1730 = vmatprep.subr.bf16.mxu0 0
        %1731 = vmatpush1.bf16.msra.mxu0 0
        %1732 = vmatprep.subr.bf16.mxu0 0
        %1733 = vmatpush1.bf16.msra.mxu0 0
        %1734 = vmatprep.subr.bf16.mxu0 0
        %1735 = vmatpush1.bf16.msra.mxu0 0
        %1736 = vmatprep.subr.bf16.mxu0 0
        %1737 = vmatpush1.bf16.msra.mxu0 0
        %1738 = vmatprep.subr.bf16.mxu0 0
        %1739 = vmatpush1.bf16.msra.mxu0 0
        %1740 = vmatprep.subr.bf16.mxu0 0
        %1741 = vmatpush1.bf16.msra.mxu0 0
        %1742 = vmatprep.subr.bf16.mxu0 0
        %1743 = vmatpush1.bf16.msra.mxu0 0
        %1744 = vmatprep.subr.bf16.mxu0 0
        %1745 = vmatpush1.bf16.msra.mxu0 0
        %1746 = vmatprep.subr.bf16.mxu0 0
        %1747 = vmatpush1.bf16.msra.mxu0 0
        %1748 = vmatprep.subr.bf16.mxu0 0
        %1749 = vmatpush1.bf16.msra.mxu0 0
        %1750 = vmatprep.subr.bf16.mxu0 0
        %1751 = vmatpush1.bf16.msra.mxu0 0
        %1752 = vmatprep.subr.bf16.mxu0 0
        %1753 = vmatpush1.bf16.msra.mxu0 0
        %1754 = vmatprep.subr.bf16.mxu0 0
        %1755 = vmatpush1.bf16.msra.mxu0 0
        %1756 = vmatprep.subr.bf16.mxu0 0
        %1757 = vmatpush1.bf16.msra.mxu0 0
        %1758 = vmatprep.mubr.bf16.mxu0 0
        %1759 = vmatmul.mubr.bf16.gmra.mrb[0].mxu0 %v1724
        %v1760 = vpop.f32.mrb[0].mxu0
        %v1761 = vadd.f32 %v1709, %v1760
        %v1762 = vpop.f32.mrb[0].mxu0
        %v1763 = vpop.f32.mrb[0].mxu0
        %v1764 = vadd.f32 %v1709, %v1763
        %v1765 = vpop.f32.mrb[0].mxu0
        %1766 = vdwg.mxu0
        %v1767 = vadd.f32 %v1761, %v649
        %v1768 = vadd.f32 %v1764, %v650
        %v1769 = vld [vmem:[%s618] sm:$0x1]
        %v1770 = vld [vmem:[%s621] sm:$0x1]
        %v1771 = vsel %vm653, %v1767, 0.0
        %1772 = vadd.xlane.f32.xlu0 %v1771
        %v1773 = vpop.xlane.xlu0 %1772
        %v1774 = vsel %vm653, %v1768, 0.0
        %1775 = vadd.xlane.f32.xlu0 %v1774
        %v1776 = vpop.xlane.xlu0 %1775
        %v1777 = vmul.f32 %v1773, %v660
        %v1778 = vmul.f32 %v1776, %v660
        %v1779 = vsub.f32 %v1767, %v1777
        %v1780 = vsub.f32 %v1768, %v1778
        %v1781 = vmul.f32 %v1779, %v1779
        %v1782 = vmul.f32 %v1780, %v1780
        %v1783 = vsel %vm653, %v1781, 0.0
        %1784 = vadd.xlane.f32.xlu0 %v1783
        %v1785 = vpop.xlane.xlu0 %1784
        %v1786 = vsel %vm653, %v1782, 0.0
        %1787 = vadd.xlane.f32.xlu0 %v1786
        %v1788 = vpop.xlane.xlu0 %1787
        %v1789 = vmul.f32 %v1785, %v660
        %v1790 = vmul.f32 %v1788, %v660
        %v1791 = vadd.f32 %v1789, 1e-06
        %v1792 = vadd.f32 %v1790, 1e-06
        %v1793 = vrsqrt.pop %v1791
        %v1794 = vrsqrt.pop %v1792
        %v1795 = vmul.f32 %v1779, %v1793
        %v1796 = vmul.f32 %v1780, %v1794
        %v1798 = vlaneseq
        %v1799 = vshrl.u32 %v1798, 7
        %v1800 = vsub.s32 0, %v1799
        %v1801 = vrot.slane %v1769, %v1800
        %v1803 = vmul.f32 %v1795, %v1801
        %v1804 = vmul.f32 %v1796, %v1801
        %v1806 = vlaneseq
        %v1807 = vshrl.u32 %v1806, 7
        %v1808 = vsub.s32 0, %v1807
        %v1809 = vrot.slane %v1770, %v1808
        %v1811 = vadd.f32 %v1803, %v1809
        %v1812 = vadd.f32 %v1804, %v1809
        %v1813 = vpack.c.bf16 %v1812, %v1811
        %v1814 = vld [vmem:[%s626] sm:$0xf]
        %v1815 = vld [vmem:[%s626 + $0x4] sm:$0xf]
        %v1816 = vld [vmem:[%s626 + $0x8] sm:$0xf]
        %v1817 = vld [vmem:[%s626 + $0xc] sm:$0xf]
        %v1818 = vld [vmem:[%s629] sm:$0x1]
        %v1820 = vlaneseq
        %v1821 = vshrl.u32 %v1820, 7
        %v1822 = vsub.s32 0, %v1821
        %v1823 = vrot.slane %v1818, %v1822
        %v1829 = vunpack.c.l.b16 %v1814
        %v1830 = vunpack.c.l.b16 %v1815
        %v1831 = vunpack.c.l.b16 %v1816
        %v1832 = vunpack.c.l.b16 %v1817
        %v1833 = vpack.c.b16 %v1830, %v1829
        %v1834 = vpack.c.b16 %v1832, %v1831
        %v1838 = vsel %vm653, %v1813, 0
        %1840 = vmatprep.subr.bf16.mxu0 0
        %1841 = vmatpush1.bf16.msra.mxu0 %v1833
        %1842 = vmatprep.subr.bf16.mxu0 0
        %1843 = vmatpush1.bf16.msra.mxu0 %v1834
        %1844 = vmatprep.subr.bf16.mxu0 0
        %1845 = vmatpush1.bf16.msra.mxu0 0
        %1846 = vmatprep.subr.bf16.mxu0 0
        %1847 = vmatpush1.bf16.msra.mxu0 0
        %1848 = vmatprep.subr.bf16.mxu0 0
        %1849 = vmatpush1.bf16.msra.mxu0 0
        %1850 = vmatprep.subr.bf16.mxu0 0
        %1851 = vmatpush1.bf16.msra.mxu0 0
        %1852 = vmatprep.subr.bf16.mxu0 0
        %1853 = vmatpush1.bf16.msra.mxu0 0
        %1854 = vmatprep.subr.bf16.mxu0 0
        %1855 = vmatpush1.bf16.msra.mxu0 0
        %1856 = vmatprep.subr.bf16.mxu0 0
        %1857 = vmatpush1.bf16.msra.mxu0 0
        %1858 = vmatprep.subr.bf16.mxu0 0
        %1859 = vmatpush1.bf16.msra.mxu0 0
        %1860 = vmatprep.subr.bf16.mxu0 0
        %1861 = vmatpush1.bf16.msra.mxu0 0
        %1862 = vmatprep.subr.bf16.mxu0 0
        %1863 = vmatpush1.bf16.msra.mxu0 0
        %1864 = vmatprep.subr.bf16.mxu0 0
        %1865 = vmatpush1.bf16.msra.mxu0 0
        %1866 = vmatprep.subr.bf16.mxu0 0
        %1867 = vmatpush1.bf16.msra.mxu0 0
        %1868 = vmatprep.subr.bf16.mxu0 0
        %1869 = vmatpush1.bf16.msra.mxu0 0
        %1870 = vmatprep.subr.bf16.mxu0 0
        %1871 = vmatpush1.bf16.msra.mxu0 0
        %1872 = vmatprep.mubr.bf16.mxu0 0
        %1873 = vmatmul.mubr.bf16.gmra.mrb[0].mxu0 %v1838
        %v1874 = vpop.f32.mrb[0].mxu0
        %v1875 = vadd.f32 %v1823, %v1874
        %v1876 = vpop.f32.mrb[0].mxu0
        %v1877 = vpop.f32.mrb[0].mxu0
        %v1878 = vadd.f32 %v1823, %v1877
        %v1879 = vpop.f32.mrb[0].mxu0
        %1880 = vdwg.mxu0
        %v1881 = vmul.f32 %v1875, 0.5
        %v1882 = vmul.f32 %v1878, 0.5
        %v1883 = vmul.f32 %v1875, 0.044715
        %v1884 = vmul.f32 %v1878, 0.044715
        %v1885 = vmul.f32 %v1883, %v1875
        %v1886 = vmul.f32 %v1884, %v1878
        %v1887 = vmul.f32 %v1885, %v1875
        %v1888 = vmul.f32 %v1886, %v1878
        %v1889 = vadd.f32 %v1875, %v1887
        %v1890 = vadd.f32 %v1878, %v1888
        %v1891 = vmul.f32 %v1889, 0.7978846
        %v1892 = vmul.f32 %v1890, 0.7978846
        %v1893 = vtanh.pop %v1891
        %v1894 = vtanh.pop %v1892
        %v1895 = vadd.f32 %v1893, 1.0
        %v1896 = vadd.f32 %v1894, 1.0
        %v1897 = vmul.f32 %v1881, %v1895
        %v1898 = vmul.f32 %v1882, %v1896
        %v1899 = vpack.c.bf16 %v1898, %v1897
        %v1900 = vld [vmem:[%s634] sm:$0xf]
        %v1901 = vld [vmem:[%s634 + $0x4] sm:$0xf]
        %v1902 = vld [vmem:[%s634 + $0x8] sm:$0xf]
        %v1903 = vld [vmem:[%s634 + $0xc] sm:$0xf]
        %v1904 = vld [vmem:[%s634 + $0x10] sm:$0xf]
        %v1905 = vld [vmem:[%s634 + $0x14] sm:$0xf]
        %v1906 = vld [vmem:[%s634 + $0x18] sm:$0xf]
        %v1907 = vld [vmem:[%s634 + $0x1c] sm:$0xf]
        %v1908 = vld [vmem:[%s634 + $0x20] sm:$0xf]
        %v1909 = vld [vmem:[%s634 + $0x24] sm:$0xf]
        %v1910 = vld [vmem:[%s634 + $0x28] sm:$0xf]
        %v1911 = vld [vmem:[%s634 + $0x2c] sm:$0xf]
        %v1912 = vld [vmem:[%s634 + $0x30] sm:$0xf]
        %v1913 = vld [vmem:[%s634 + $0x34] sm:$0xf]
        %v1914 = vld [vmem:[%s634 + $0x38] sm:$0xf]
        %v1915 = vld [vmem:[%s634 + $0x3c] sm:$0xf]
        %v1916 = vld [vmem:[%s637] sm:$0x1]
        %v1918 = vlaneseq
        %v1919 = vshrl.u32 %v1918, 7
        %v1920 = vsub.s32 0, %v1919
        %v1921 = vrot.slane %v1916, %v1920
        %v1939 = vunpack.c.l.b16 %v1900
        %v1940 = vunpack.c.l.b16 %v1901
        %v1941 = vunpack.c.l.b16 %v1902
        %v1942 = vunpack.c.l.b16 %v1903
        %v1943 = vunpack.c.l.b16 %v1904
        %v1944 = vunpack.c.l.b16 %v1905
        %v1945 = vunpack.c.l.b16 %v1906
        %v1946 = vunpack.c.l.b16 %v1907
        %v1947 = vunpack.c.l.b16 %v1908
        %v1948 = vunpack.c.l.b16 %v1909
        %v1949 = vunpack.c.l.b16 %v1910
        %v1950 = vunpack.c.l.b16 %v1911
        %v1951 = vunpack.c.l.b16 %v1912
        %v1952 = vunpack.c.l.b16 %v1913
        %v1953 = vunpack.c.l.b16 %v1914
        %v1954 = vunpack.c.l.b16 %v1915
        %v1955 = vpack.c.b16 %v1940, %v1939
        %v1956 = vpack.c.b16 %v1942, %v1941
        %v1957 = vpack.c.b16 %v1944, %v1943
        %v1958 = vpack.c.b16 %v1946, %v1945
        %v1959 = vpack.c.b16 %v1948, %v1947
        %v1960 = vpack.c.b16 %v1950, %v1949
        %v1961 = vpack.c.b16 %v1952, %v1951
        %v1962 = vpack.c.b16 %v1954, %v1953
        %1971 = vmatprep.subr.bf16.mxu0 0
        %1972 = vmatpush1.bf16.msra.mxu0 %v1955
        %1973 = vmatprep.subr.bf16.mxu0 0
        %1974 = vmatpush1.bf16.msra.mxu0 %v1956
        %1975 = vmatprep.subr.bf16.mxu0 0
        %1976 = vmatpush1.bf16.msra.mxu0 %v1957
        %1977 = vmatprep.subr.bf16.mxu0 0
        %1978 = vmatpush1.bf16.msra.mxu0 %v1958
        %1979 = vmatprep.subr.bf16.mxu0 0
        %1980 = vmatpush1.bf16.msra.mxu0 %v1959
        %1981 = vmatprep.subr.bf16.mxu0 0
        %1982 = vmatpush1.bf16.msra.mxu0 %v1960
        %1983 = vmatprep.subr.bf16.mxu0 0
        %1984 = vmatpush1.bf16.msra.mxu0 %v1961
        %1985 = vmatprep.subr.bf16.mxu0 0
        %1986 = vmatpush1.bf16.msra.mxu0 %v1962
        %1987 = vmatprep.subr.bf16.mxu0 0
        %1988 = vmatpush1.bf16.msra.mxu0 0
        %1989 = vmatprep.subr.bf16.mxu0 0
        %1990 = vmatpush1.bf16.msra.mxu0 0
        %1991 = vmatprep.subr.bf16.mxu0 0
        %1992 = vmatpush1.bf16.msra.mxu0 0
        %1993 = vmatprep.subr.bf16.mxu0 0
        %1994 = vmatpush1.bf16.msra.mxu0 0
        %1995 = vmatprep.subr.bf16.mxu0 0
        %1996 = vmatpush1.bf16.msra.mxu0 0
        %1997 = vmatprep.subr.bf16.mxu0 0
        %1998 = vmatpush1.bf16.msra.mxu0 0
        %1999 = vmatprep.subr.bf16.mxu0 0
        %2000 = vmatpush1.bf16.msra.mxu0 0
        %2001 = vmatprep.subr.bf16.mxu0 0
        %2002 = vmatpush1.bf16.msra.mxu0 0
        %2003 = vmatprep.mubr.bf16.mxu0 0
        %2004 = vmatmul.mubr.bf16.gmra.mrb[0].mxu0 %v1899
        %v2005 = vpop.f32.mrb[0].mxu0
        %v2006 = vadd.f32 %v1921, %v2005
        %v2007 = vpop.f32.mrb[0].mxu0
        %v2008 = vpop.f32.mrb[0].mxu0
        %v2009 = vadd.f32 %v1921, %v2008
        %v2010 = vpop.f32.mrb[0].mxu0
        %2011 = vdwg.mxu0
        %v2012 = vadd.f32 %v2006, %v1767
        %v2013 = vadd.f32 %v2009, %v1768
        %2014 = vst.msk [vmem:[#allocation2] sm:$0xff] %vm653, %v2012
        %2015 = vst.msk [vmem:[#allocation2 + $0x8] sm:$0xff] %vm653, %v2013
        %p2016 = scmp.eq.s32.totalorder %s30, 1
        // Predicated region
        $region77: #{tpu_custom_call.1} parent=71 // pred_check
          %p2017 = pneg %p2016
        $region78: #{tpu_custom_call.1} parent=71 // pred_check_branch
          %2019 = sbr.rel (%p2017) target = $region80
        $region79: #{tpu_custom_call.1} parent=71 // pred_region
          %2020 = vst.msk [vmem:[#allocation3] sm:$0xff] %vm653, %v2012
          %2021 = vst.msk [vmem:[#allocation3 + $0x8] sm:$0xff] %vm653, %v2013
        $region80: #{tpu_custom_call.1} parent=71 // pred_fallthru
          _
        // Predicated region
        $region81: #{tpu_custom_call.1} parent=71 // pred_check
          %p2022 = pneg %p393
        $region82: #{tpu_custom_call.1} parent=71 // pred_check_branch
          %2024 = sbr.rel (%p2022) target = $region84
        $region83: #{tpu_custom_call.1} parent=71 // pred_region
          %s2025 = smul.u32 2, %s29
          %s2027 = ssub.s32 256, 256
          %2028 = vsyncadd [#allocation4], %s2027
          %s2029 = smul.addr %s2025, 128
          %s2030 = scalar_lea.hbm %s13, %s2029
          %s2031 = sshll.u32 [#allocation3], 4
          %s2032 = int_to_ptr.vmem [resolvable:$true] %s2031
          %2037 = dma.vmem_to_hbm [thread:$0]  %s2032, 256, %s2030, [#allocation4], 128, 128, 8
        $region84: #{tpu_custom_call.1} parent=71 // pred_fallthru
          _
        // Predicated region
        $region85: #{tpu_custom_call.1} parent=71 // pred_check
          %p2038 = pneg %p393
        $region86: #{tpu_custom_call.1} parent=71 // pred_check_branch
          %2040 = sbr.rel (%p2038) target = $region88
        $region87: #{tpu_custom_call.1} parent=71 // pred_region
          %2041 = dma.done [#allocation4], 256
        $region88: #{tpu_custom_call.1} parent=71 // pred_fallthru
          _
      $region72: #{tpu_custom_call.1} parent=5 // pred_fallthru
        _
      %p2042 = scmp.le.s32.totalorder 2, %s20
      // Predicated region
      $region89: #{tpu_custom_call.1} parent=5 // pred_check
        %p2043 = pneg %p2042
      $region90: #{tpu_custom_call.1} parent=5 // pred_check_branch
        %2045 = sbr.rel (%p2043) target = $region92
      $region91: #{tpu_custom_call.1} parent=5 // pred_region
        %s2046 = ssub.s32 %s20, 2
      $region92: #{tpu_custom_call.1} parent=5 // pred_fallthru
        _
    $region6: #{tpu_custom_call.1} parent=1 // loop_footer
      %s24 = sadd.s32 1, %s20
    $region7: #{tpu_custom_call.1} parent=1 // loop_footer_branch
      %19 = sbr.rel target = $region3
    $region8: #{tpu_custom_call.1} parent=1 // loop_exit
      _
    %2047 = vsyncpa [#allocation4], 1
    %s2048 = scalar_lea.sflag [#allocation4], 1
    %2049 = vsyncpa %s2048, 1

</llo_original>
